<compile_context>
chip_gen: v5e
topology: v5e:2x2
jax: 0.10.0
libtpu: 0.0.40
codegen_flags: <defaults>
</compile_context>

<pallas_src>
import jax
import jax.numpy as jnp
from jax import lax
from jax.experimental import pallas as pl
from jax.experimental.pallas import tpu as pltpu


def _round_up(a, b):
    return (a + b - 1) // b * b


def make_trace_kernel(emb, hid1, hid2, out_pad):
    f32 = jnp.float32
    bf16 = jnp.bfloat16

    def kernel(x_ref, adj_ref, w128_ref, wf1c_ref, sv_ref, o_ref):
        x = x_ref[...]                                   # (BR, emb+2) f32, cols [emb | x1 | x2]
        x3 = x[:, 0:emb]                                 # lane-0 aligned GAT operand
        x1 = x[:, emb:emb + 1]
        x2 = x[:, emb + 1:emb + 2]

        # constant slabs: static (zero-cost) ref-view carving
        wg  = w128_ref[0:emb, 0:out_pad]                                  # (emb, out_pad)  bf16
        wf2 = w128_ref[emb:emb + hid1, 0:hid2]                            # (hid1, hid2)    bf16
        wf3 = w128_ref[emb + hid1:emb + hid1 + hid2, 0:out_pad]           # (hid2, out_pad) bf16

        v1   = sv_ref[0:1, 0:hid1]                                        # w1 @ Wf1_a
        v2   = sv_ref[1:2, 0:hid1]                                        # w2 @ Wf1_b
        bfc1 = sv_ref[2:3, 0:hid1]                                        # folded fc1 bias
        asrc = sv_ref[3:4, 0:out_pad]
        adst = sv_ref[4:5, 0:out_pad]
        bfc2 = sv_ref[5:6, 0:hid2]
        bfc3 = sv_ref[6:7, 0:out_pad]

        # ---- single-head GAT (self-loops baked into adj, bias folded into fc1) ----
        h = jnp.dot(x3.astype(bf16), wg, preferred_element_type=f32)      # (BR, out_pad)
        # e_dst_i = adst . h_i -> VPU multiply + XLU lane reduce (no width-1 MXU output)
        e_dst = jnp.sum(h * adst, axis=1, keepdims=True)                  # (BR, 1)
        # e_src_j = asrc . h_j, produced directly as a lane-oriented row via A @ B.T
        e_src = lax.dot_general(asrc, h, (((1,), (1,)), ((), ())),
                                preferred_element_type=f32)               # (1, BR)
        logits = e_dst + e_src                                            # (BR, BR)  [dst, src]
        logits = jnp.maximum(logits, 0.2 * logits)                        # LeakyReLU(0.2)
        adj = adj_ref[...]                                                # (BR, BR) {0,1} f32
        m = jnp.max(logits, axis=1, keepdims=True)
        p = jnp.exp(logits - m) * adj                                     # block-diag edge mask
        inv = pl.reciprocal(jnp.sum(p, axis=1, keepdims=True), approx=True)  # EUP slot
        alpha = p * inv
        g = jnp.dot(alpha.astype(bf16), h.astype(bf16),
                    preferred_element_type=f32)                           # (BR, out_pad)

        # ---- fc1 with folded encoders (no concat) + fc2 / fc3 (lane-dense 128-wide store) ----
        pre = (x1 * v1 + x2 * v2 + bfc1
               + jnp.dot(g.astype(bf16), wf1c_ref[...], preferred_element_type=f32))  # (BR, hid1)
        z = jnp.maximum(pre, 0.0)
        z = jnp.maximum(jnp.dot(z.astype(bf16), wf2, preferred_element_type=f32) + bfc2, 0.0)
        o_ref[...] = jnp.dot(z.astype(bf16), wf3, preferred_element_type=f32) + bfc3

    return kernel


def fold_params(params, emb):
    """One-time constant folding of encoder1/encoder2/GAT-bias through fc1, bf16 weight cast,
    lane-padding of out_dim to 128, and packing of all parameters into 3 slabs."""
    out_dim = params['wf3'].shape[1]
    hid1 = params['wf1'].shape[1]          # 3 * 128
    hid2 = params['wf2'].shape[1]          # 128
    out_pad = _round_up(out_dim, 128)

    wf1 = params['wf1']                    # (3*out_dim, hid1)
    Wa = wf1[0:out_dim]
    Wb = wf1[out_dim:2 * out_dim]
    Wc = wf1[2 * out_dim:3 * out_dim]

    v1 = params['w1'] @ Wa                 # (1, hid1)
    v2 = params['w2'] @ Wb                 # (1, hid1)
    bf1_fold = (params['bf1'] + params['b1'] @ Wa + params['b2'] @ Wb
                + params['bg'] @ Wc)       # (1, hid1)

    def pad_cols(a, w):
        return jnp.pad(a, ((0, 0), (0, w - a.shape[1])))

    # bf16 weight slab, 128 lanes: [wg | wf2 | wf3], rows carved in-kernel
    slab_w = max(out_pad, hid2)
    w128 = jnp.concatenate([pad_cols(params['wg'], slab_w),
                            pad_cols(params['wf2'], slab_w),
                            pad_cols(params['wf3'], slab_w)], axis=0).astype(jnp.bfloat16)

    # fc1's GAT block, rows padded to out_pad (matches zero-padded g columns)
    wf1c = jnp.pad(Wc, ((0, out_pad - out_dim), (0, 0))).astype(jnp.bfloat16)   # (out_pad, hid1)

    # small f32 slab: rank-1 fc1 terms, attention vectors, fc2/fc3 biases (one row each)
    sv_w = max(hid1, out_pad, hid2)
    sv = jnp.concatenate([
        pad_cols(v1, sv_w), pad_cols(v2, sv_w), pad_cols(bf1_fold, sv_w),
        pad_cols(params['asrc'].reshape(1, -1), sv_w),
        pad_cols(params['adst'].reshape(1, -1), sv_w),
        pad_cols(params['bf2'], sv_w),
        pad_cols(params['bf3'], sv_w),
        jnp.zeros((1, sv_w), jnp.float32),
    ], axis=0)                                                                   # (8, sv_w)

    return dict(w128=w128, wf1c=wf1c, sv=sv, emb=emb,
                out_dim=out_dim, out_pad=out_pad, hid1=hid1, hid2=hid2)


def trace_model_forward(xs, edge_indices, folded, graphs_per_block=8):
    """xs: (G, N, emb+2) f32 with original column order [x1, x2, emb...];
    edge_indices: (G, 2, E) int32 with [src; dst] rows."""
    G, N, _ = xs.shape
    emb, hid1, hid2 = folded['emb'], folded['hid1'], folded['hid2']
    out_dim, out_pad = folded['out_dim'], folded['out_pad']

    gpb = graphs_per_block
    block_rows = gpb * N                    # 128 rows per grid step

    # reorder columns to [emb | x1 | x2] so the GAT operand is lane-0 aligned
    x_re = jnp.concatenate([xs[..., 2:], xs[..., 0:1], xs[..., 1:2]], axis=-1)

    # densify per-graph edge_index into adj[dst, src] with self-loops (GATConv default)
    def one_adj(ei):
        a = jnp.zeros((N, N), jnp.float32).at[ei[1], ei[0]].set(1.0)
        return jnp.maximum(a, jnp.eye(N, dtype=jnp.float32))
    adj_g = jax.vmap(one_adj)(edge_indices)                      # (G, N, N)

    # pad graph count to a multiple of graphs_per_block; padded graphs keep a self-loop-only
    # adjacency so their softmax rows stay well-defined (outputs are sliced away below)
    Gp = _round_up(G, gpb)
    if Gp != G:
        x_re = jnp.concatenate(
            [x_re, jnp.zeros((Gp - G, N, emb + 2), x_re.dtype)], axis=0)
        adj_g = jnp.concatenate(
            [adj_g, jnp.broadcast_to(jnp.eye(N, dtype=jnp.float32), (Gp - G, N, N))], axis=0)
    num_blocks = Gp // gpb

    # block-diagonal adjacency: gpb graphs stacked per block
    adj_b = (adj_g.reshape(num_blocks, gpb, 1, N, N)
             * jnp.eye(gpb, dtype=jnp.float32)[None, :, :, None, None])
    adj_b = adj_b.transpose(0, 1, 3, 2, 4).reshape(num_blocks * block_rows, block_rows)
    # TODO(synk): for large N, keep adj as int8 (or build the mask from edge lists via
    # PrefetchScalarGridSpec scalar prefetch) and tile attention flash-style over dst-row blocks
    # with online softmax to stay under v7x's 64 MiB VMEM.

    x_flat = x_re.reshape(num_blocks * block_rows, emb + 2)
    w128, wf1c, sv = folded['w128'], folded['wf1c'], folded['sv']

    kernel = make_trace_kernel(emb, hid1, hid2, out_pad)
    const = lambda shape: pl.BlockSpec(shape, lambda b: (0, 0))   # resident weights, DMA'd once

    y = pl.pallas_call(
        kernel,
        out_shape=jax.ShapeDtypeStruct((num_blocks * block_rows, out_pad), jnp.float32),
        grid=(num_blocks,),
        in_specs=[
            pl.BlockSpec((block_rows, emb + 2), lambda b: (b, 0)),       # x: double-buffered
            pl.BlockSpec((block_rows, block_rows), lambda b: (b, 0)),    # adj: double-buffered
            const(w128.shape),
            const(wf1c.shape),
            const(sv.shape),
        ],
        out_specs=pl.BlockSpec((block_rows, out_pad), lambda b: (b, 0)),
        compiler_params=pltpu.CompilerParams(
            dimension_semantics=("parallel",)),                          # v7x: 2 TCs
    )(x_flat, adj_b, w128, wf1c, sv)

    return y.reshape(Gp, N, out_pad)[:G, :, :out_dim]


def reference_forward(params, x, edge_index):
    """Pure-JAX f32 reference of the PyTorch module (same GATConv assumptions)."""
    N = x.shape[0]
    x1, x2, x3 = x[:, 0:1], x[:, 1:2], x[:, 2:]
    e1 = x1 @ params['w1'] + params['b1']
    e2 = x2 @ params['w2'] + params['b2']
    h = x3 @ params['wg']
    adj = jnp.zeros((N, N), jnp.float32).at[edge_index[1], edge_index[0]].set(1.0)
    adj = jnp.maximum(adj, jnp.eye(N, dtype=jnp.float32))
    logits = h @ params['adst'] + (h @ params['asrc']).T
    logits = jnp.where(logits > 0, logits, 0.2 * logits)
    logits = jnp.where(adj > 0, logits, -1e30)
    alpha = jax.nn.softmax(logits, axis=1)
    e3 = alpha @ h + params['bg']
    xc = jnp.concatenate([e1, e2, e3], axis=1)
    z = jax.nn.relu(xc @ params['wf1'] + params['bf1'])
    z = jax.nn.relu(z @ params['wf2'] + params['bf2'])
    return z @ params['wf3'] + params['bf3']


if __name__ == "__main__":
    N = 16              # nodes (trace events) per graph
    emb = 32            # embedding_size
    out_dim = 64
    G = 32              # graphs in the stream; 8 per 128-row block -> grid of 4

    key = jax.random.PRNGKey(0)
    kx, _ = jax.random.split(key)
    xs = jax.random.normal(kx, (G, N, emb + 2), jnp.float32)

    # ring graph in both directions, same topology for every graph
    idx = jnp.arange(N, dtype=jnp.int32)
    src = jnp.concatenate([idx, (idx + 1) % N])
    dst = jnp.concatenate([(idx + 1) % N, idx])
    edge_index = jnp.stack([src, dst])                         # (2, 2N)
    edge_indices = jnp.broadcast_to(edge_index, (G, 2, 2 * N))

    def init(k, shape, scale=0.1):
        return scale * jax.random.normal(k, shape, jnp.float32)

    ks = jax.random.split(jax.random.PRNGKey(42), 14)
    params = dict(
        w1=init(ks[0], (1, out_dim)),            b1=init(ks[1], (1, out_dim)),
        w2=init(ks[2], (1, out_dim)),            b2=init(ks[3], (1, out_dim)),
        wg=init(ks[4], (emb, out_dim)),          bg=init(ks[5], (1, out_dim)),
        asrc=init(ks[6], (out_dim, 1)),          adst=init(ks[7], (out_dim, 1)),
        wf1=init(ks[8], (3 * out_dim, 3 * 128)), bf1=init(ks[9], (1, 3 * 128)),
        wf2=init(ks[10], (3 * 128, 128)),        bf2=init(ks[11], (1, 128)),
        wf3=init(ks[12], (128, out_dim)),        bf3=init(ks[13], (1, out_dim)),
    )

    folded = fold_params(params, emb)            # one-time weight folding / packing / bf16 cast
    out = trace_model_forward(xs, edge_indices, folded)
    jax.block_until_ready(out)
    assert out.shape == (G, N, out_dim) and out.dtype == jnp.float32
    assert bool(jnp.all(jnp.isfinite(out)))

    # loose check vs the f32 reference (bf16 MXU operands + approx reciprocal => small drift)
    ref = jax.vmap(lambda xg, eg: reference_forward(params, xg, eg))(xs, edge_indices)
    rel_err = float(jnp.max(jnp.abs(out - ref)) / (jnp.max(jnp.abs(ref)) + 1e-6))
    assert rel_err < 0.08, f"rel_err={rel_err}"
    print("KERNEL_OK")
</pallas_src>

<mosaic_0001>
module attributes {stable_mosaic.version = 11 : i64} {
  func.func @kernel(%arg0: i32, %arg1: memref<128x34xf32, #tpu.memory_space<vmem>>, %arg2: memref<128x128xf32, #tpu.memory_space<vmem>>, %arg3: memref<544x128xbf16, #tpu.memory_space<vmem>>, %arg4: memref<128x384xbf16, #tpu.memory_space<vmem>>, %arg5: memref<8x384xf32, #tpu.memory_space<vmem>>, %arg6: memref<128x128xf32, #tpu.memory_space<vmem>>) attributes {dimension_semantics = [#tpu.dimension_semantics<parallel>], iteration_bounds = array<i64: 4>, scalar_prefetch = 0 : i64, scratch_operands = 0 : i64, tpu.core_type = #tpu.core_type<tc>, window_params = [{transform_indices = @transform_0, window_bounds = array<i64: 128, 34>}, {transform_indices = @transform_1, window_bounds = array<i64: 128, 128>}, {pipeline_mode = #tpu.pipeline_mode<synchronous>, transform_indices = @transform_2, window_bounds = array<i64: 544, 128>}, {pipeline_mode = #tpu.pipeline_mode<synchronous>, transform_indices = @transform_3, window_bounds = array<i64: 128, 384>}, {pipeline_mode = #tpu.pipeline_mode<synchronous>, transform_indices = @transform_4, window_bounds = array<i64: 8, 384>}, {transform_indices = @transform_5, window_bounds = array<i64: 128, 128>}]} {
    %c0 = arith.constant 0 : index
    %c0_0 = arith.constant 0 : index
    %0 = vector.load %arg1[%c0, %c0_0] : memref<128x34xf32, #tpu.memory_space<vmem>>, vector<128x34xf32>
    %1 = vector.extract_strided_slice %0 {offsets = [0, 0], sizes = [128, 32], strides = [1, 1]} : vector<128x34xf32> to vector<128x32xf32>
    %2 = vector.extract_strided_slice %0 {offsets = [0, 32], sizes = [128, 1], strides = [1, 1]} : vector<128x34xf32> to vector<128x1xf32>
    %3 = vector.extract_strided_slice %0 {offsets = [0, 33], sizes = [128, 1], strides = [1, 1]} : vector<128x34xf32> to vector<128x1xf32>
    %c0_1 = arith.constant 0 : index
    %c0_2 = arith.constant 0 : index
    %4 = vector.load %arg3[%c0_1, %c0_2] : memref<544x128xbf16, #tpu.memory_space<vmem>>, vector<32x128xbf16>
    %c32 = arith.constant 32 : index
    %c0_3 = arith.constant 0 : index
    %5 = vector.load %arg3[%c32, %c0_3] : memref<544x128xbf16, #tpu.memory_space<vmem>>, vector<384x128xbf16>
    %c416 = arith.constant 416 : index
    %c0_4 = arith.constant 0 : index
    %6 = vector.load %arg3[%c416, %c0_4] : memref<544x128xbf16, #tpu.memory_space<vmem>>, vector<128x128xbf16>
    %c0_5 = arith.constant 0 : index
    %c0_6 = arith.constant 0 : index
    %7 = vector.load %arg5[%c0_5, %c0_6] : memref<8x384xf32, #tpu.memory_space<vmem>>, vector<1x384xf32>
    %c1 = arith.constant 1 : index
    %c0_7 = arith.constant 0 : index
    %8 = vector.load %arg5[%c1, %c0_7] : memref<8x384xf32, #tpu.memory_space<vmem>>, vector<1x384xf32>
    %c2 = arith.constant 2 : index
    %c0_8 = arith.constant 0 : index
    %9 = vector.load %arg5[%c2, %c0_8] : memref<8x384xf32, #tpu.memory_space<vmem>>, vector<1x384xf32>
    %c3 = arith.constant 3 : index
    %c0_9 = arith.constant 0 : index
    %10 = vector.load %arg5[%c3, %c0_9] : memref<8x384xf32, #tpu.memory_space<vmem>>, vector<1x128xf32>
    %c4 = arith.constant 4 : index
    %c0_10 = arith.constant 0 : index
    %11 = vector.load %arg5[%c4, %c0_10] : memref<8x384xf32, #tpu.memory_space<vmem>>, vector<1x128xf32>
    %c5 = arith.constant 5 : index
    %c0_11 = arith.constant 0 : index
    %12 = vector.load %arg5[%c5, %c0_11] : memref<8x384xf32, #tpu.memory_space<vmem>>, vector<1x128xf32>
    %c6 = arith.constant 6 : index
    %c0_12 = arith.constant 0 : index
    %13 = vector.load %arg5[%c6, %c0_12] : memref<8x384xf32, #tpu.memory_space<vmem>>, vector<1x128xf32>
    %14 = arith.truncf %1 : vector<128x32xf32> to vector<128x32xbf16>
    %cst = arith.constant dense<0.000000e+00> : vector<128x128xf32>
    %15 = tpu.matmul %14, %4, %cst {dimension_numbers = #tpu.dot_dimension_numbers<[1], [0], [0], [1], [0, 0, 1, 1], [], []>} : vector<128x32xbf16>, vector<32x128xbf16>, vector<128x128xf32> -> vector<128x128xf32>
    %16 = vector.broadcast %11 : vector<1x128xf32> to vector<128x128xf32>
    %17 = arith.mulf %15, %16 : vector<128x128xf32>
    %cst_13 = arith.constant dense<0.000000e+00> : vector<128xf32>
    %18 = vector.multi_reduction <add>, %17, %cst_13 [1] : vector<128x128xf32> to vector<128xf32>
    %19 = vector.shape_cast %18 : vector<128xf32> to vector<128x1xf32>
    %cst_14 = arith.constant dense<0.000000e+00> : vector<1x128xf32>
    %20 = tpu.matmul %10, %15, %cst_14 {dimension_numbers = #tpu.dot_dimension_numbers<[1], [1], [0], [0], [0, 0, 1, 0], [], []>} : vector<1x128xf32>, vector<128x128xf32>, vector<1x128xf32> -> vector<1x128xf32>
    %21 = vector.broadcast %19 : vector<128x1xf32> to vector<128x128xf32>
    %22 = vector.broadcast %20 : vector<1x128xf32> to vector<128x128xf32>
    %23 = arith.addf %21, %22 : vector<128x128xf32>
    %cst_15 = arith.constant 2.000000e-01 : f32
    %24 = vector.broadcast %cst_15 : f32 to vector<128x128xf32>
    %25 = arith.mulf %24, %23 : vector<128x128xf32>
    %26 = arith.maximumf %23, %25 : vector<128x128xf32>
    %c0_16 = arith.constant 0 : index
    %c0_17 = arith.constant 0 : index
    %27 = vector.load %arg2[%c0_16, %c0_17] : memref<128x128xf32, #tpu.memory_space<vmem>>, vector<128x128xf32>
    %cst_18 = arith.constant dense<0xFF800000> : vector<128xf32>
    %28 = vector.multi_reduction <maximumf>, %26, %cst_18 [1] : vector<128x128xf32> to vector<128xf32>
    %29 = vector.shape_cast %28 : vector<128xf32> to vector<128x1xf32>
    %30 = vector.broadcast %29 : vector<128x1xf32> to vector<128x128xf32>
    %31 = arith.subf %26, %30 : vector<128x128xf32>
    %32 = math.exp %31 : vector<128x128xf32>
    %33 = arith.mulf %32, %27 : vector<128x128xf32>
    %cst_19 = arith.constant dense<0.000000e+00> : vector<128xf32>
    %34 = vector.multi_reduction <add>, %33, %cst_19 [1] : vector<128x128xf32> to vector<128xf32>
    %35 = vector.shape_cast %34 : vector<128xf32> to vector<128x1xf32>
    %36 = tpu.reciprocal %35 {approx = true} : vector<128x1xf32> -> vector<128x1xf32>
    %37 = vector.broadcast %36 : vector<128x1xf32> to vector<128x128xf32>
    %38 = arith.mulf %33, %37 : vector<128x128xf32>
    %39 = arith.truncf %38 : vector<128x128xf32> to vector<128x128xbf16>
    %40 = arith.truncf %15 : vector<128x128xf32> to vector<128x128xbf16>
    %cst_20 = arith.constant dense<0.000000e+00> : vector<128x128xf32>
    %41 = tpu.matmul %39, %40, %cst_20 {dimension_numbers = #tpu.dot_dimension_numbers<[1], [0], [0], [1], [0, 0, 1, 1], [], []>} : vector<128x128xbf16>, vector<128x128xbf16>, vector<128x128xf32> -> vector<128x128xf32>
    %42 = vector.broadcast %2 : vector<128x1xf32> to vector<128x384xf32>
    %43 = vector.broadcast %7 : vector<1x384xf32> to vector<128x384xf32>
    %44 = arith.mulf %42, %43 : vector<128x384xf32>
    %45 = vector.broadcast %3 : vector<128x1xf32> to vector<128x384xf32>
    %46 = vector.broadcast %8 : vector<1x384xf32> to vector<128x384xf32>
    %47 = arith.mulf %45, %46 : vector<128x384xf32>
    %48 = arith.addf %44, %47 : vector<128x384xf32>
    %49 = vector.broadcast %9 : vector<1x384xf32> to vector<128x384xf32>
    %50 = arith.addf %48, %49 : vector<128x384xf32>
    %51 = arith.truncf %41 : vector<128x128xf32> to vector<128x128xbf16>
    %c0_21 = arith.constant 0 : index
    %c0_22 = arith.constant 0 : index
    %52 = vector.load %arg4[%c0_21, %c0_22] : memref<128x384xbf16, #tpu.memory_space<vmem>>, vector<128x384xbf16>
    %cst_23 = arith.constant dense<0.000000e+00> : vector<128x384xf32>
    %53 = tpu.matmul %51, %52, %cst_23 {dimension_numbers = #tpu.dot_dimension_numbers<[1], [0], [0], [1], [0, 0, 1, 1], [], []>} : vector<128x128xbf16>, vector<128x384xbf16>, vector<128x384xf32> -> vector<128x384xf32>
    %54 = arith.addf %50, %53 : vector<128x384xf32>
    %cst_24 = arith.constant 0.000000e+00 : f32
    %55 = vector.broadcast %cst_24 : f32 to vector<128x384xf32>
    %56 = arith.maximumf %54, %55 : vector<128x384xf32>
    %57 = arith.truncf %56 : vector<128x384xf32> to vector<128x384xbf16>
    %cst_25 = arith.constant dense<0.000000e+00> : vector<128x128xf32>
    %58 = tpu.matmul %57, %5, %cst_25 {dimension_numbers = #tpu.dot_dimension_numbers<[1], [0], [0], [1], [0, 0, 1, 1], [], []>} : vector<128x384xbf16>, vector<384x128xbf16>, vector<128x128xf32> -> vector<128x128xf32>
    %59 = vector.broadcast %12 : vector<1x128xf32> to vector<128x128xf32>
    %60 = arith.addf %58, %59 : vector<128x128xf32>
    %cst_26 = arith.constant 0.000000e+00 : f32
    %61 = vector.broadcast %cst_26 : f32 to vector<128x128xf32>
    %62 = arith.maximumf %60, %61 : vector<128x128xf32>
    %63 = arith.truncf %62 : vector<128x128xf32> to vector<128x128xbf16>
    %cst_27 = arith.constant dense<0.000000e+00> : vector<128x128xf32>
    %64 = tpu.matmul %63, %6, %cst_27 {dimension_numbers = #tpu.dot_dimension_numbers<[1], [0], [0], [1], [0, 0, 1, 1], [], []>} : vector<128x128xbf16>, vector<128x128xbf16>, vector<128x128xf32> -> vector<128x128xf32>
    %65 = vector.broadcast %13 : vector<1x128xf32> to vector<128x128xf32>
    %66 = arith.addf %64, %65 : vector<128x128xf32>
    %c0_28 = arith.constant 0 : index
    %c0_29 = arith.constant 0 : index
    %67 = vector.load %arg6[%c0_28, %c0_29] : memref<128x128xf32, #tpu.memory_space<vmem>>, vector<128x128xf32>
    tpu.vector_store %arg6[%c0_28, %c0_29], %66 {strides = array<i32>} : memref<128x128xf32, #tpu.memory_space<vmem>>, vector<128x128xf32>,
    return
  }
  func.func @transform_0(%arg0: i32) -> (i32, i32) {
    %c0_i32 = arith.constant 0 : i32
    %c0_i32_0 = arith.constant 0 : i32
    return %arg0, %c0_i32 : i32, i32
  }
  func.func @transform_1(%arg0: i32) -> (i32, i32) {
    %c0_i32 = arith.constant 0 : i32
    %c0_i32_0 = arith.constant 0 : i32
    return %arg0, %c0_i32 : i32, i32
  }
  func.func @transform_2(%arg0: i32) -> (i32, i32) {
    %c0_i32 = arith.constant 0 : i32
    %c0_i32_0 = arith.constant 0 : i32
    %c0_i32_1 = arith.constant 0 : i32
    return %c0_i32, %c0_i32_0 : i32, i32
  }
  func.func @transform_3(%arg0: i32) -> (i32, i32) {
    %c0_i32 = arith.constant 0 : i32
    %c0_i32_0 = arith.constant 0 : i32
    %c0_i32_1 = arith.constant 0 : i32
    return %c0_i32, %c0_i32_0 : i32, i32
  }
  func.func @transform_4(%arg0: i32) -> (i32, i32) {
    %c0_i32 = arith.constant 0 : i32
    %c0_i32_0 = arith.constant 0 : i32
    %c0_i32_1 = arith.constant 0 : i32
    return %c0_i32, %c0_i32_0 : i32, i32
  }
  func.func @transform_5(%arg0: i32) -> (i32, i32) {
    %c0_i32 = arith.constant 0 : i32
    %c0_i32_0 = arith.constant 0 : i32
    return %arg0, %c0_i32 : i32, i32
  }
}

</mosaic_0001>

<llo_original>
// kernel: tpu_custom_call.1
$region0: #{tpu_custom_call.1}
  #allocation0 [shape = 'u32[]', space=smem, size = 0x4, offset = 0x4, fixed_abs, tag = 'smem constant byte address 0x4 - core index']
  #allocation1 [shape = 'u32[72,128]{1,0:T(1,128)}', space=vmem, size = 0x9000, scoped, tag = 'internal scratch']
  %s0 = inlined_call_operand.vmem [shape: f32[512,34], index: 0, kind: input, shape index: {}]
  %s1 = inlined_call_operand.vmem [shape: f32[512,128], index: 1, kind: input, shape index: {}]
  %s2 = inlined_call_operand.hbm [shape: bf16[544,128], index: 2, kind: input, shape index: {}]
  %s3 = inlined_call_operand.hbm [shape: bf16[128,384], index: 3, kind: input, shape index: {}]
  %s4 = inlined_call_operand.vmem [shape: f32[8,384], index: 4, kind: input, shape index: {}]
  %s5 = inlined_call_operand.hbm [shape: f32[512,128], index: 5, kind: output, shape index: {}]
  %s6 = sld [smem:[#allocation0]]
  $region61: #{tpu_custom_call.1} parent=0
    _
  %s8 = ssub.s32 1, %s6
  %s9 = scalar_select 0, %s8, %s6
  $region1: #{tpu_custom_call.1} parent=0
    #allocation2 [shape = 'u8[139264]{0}', space=vmem, size = 0x22000, scoped, tag = 'input window, operand 2, single buffered']
    #allocation3 [shape = 's32[2]{0}', space=sflag, size = 0x8, scoped, tag = 'scoped memory for tpu_custom_call.1']
    #allocation4 [shape = 's32[2]{0}', space=sflag, size = 0x8, scoped, tag = 'scoped memory for tpu_custom_call.1']
    #allocation5 [shape = 'u8[98304]{0}', space=vmem, size = 0x18000, scoped, tag = 'input window, operand 3, single buffered']
    #allocation6 [shape = 's32[1]{0}', space=sflag, size = 0x4, scoped, tag = 'scoped memory for tpu_custom_call.1']
    #allocation7 [shape = 'u8[131072]{0}', space=vmem, size = 0x20000, scoped, tag = 'output window, operand 0']
    %10 = vsyncpa [#allocation3], 0
    %11 = vsyncpa [#allocation6], 0
    %12 = vsyncpa [#allocation4], 0
    %s13 = scalar_lea.sflag [#allocation4], 1
    %14 = vsyncpa %s13, 0
    loop: start=0, step=1, limit=6
    $region2: #{tpu_custom_call.1} parent=1 // loop_pre_header
      _
    $region3: #{tpu_custom_call.1} parent=1 // loop_header
      %s16 = sphi 0, %s20
      %p17 = scmp.ge.s32.totalorder %s16, 6
      %s26 = sphi 0, %s28
      %s29 = sphi 0, %s26
      %s30 = sphi 0, %s29
      %s46 = sphi 0, %s30
      %s52 = sphi 0, %s54
      %s55 = sphi 0, %s52
      %s56 = sphi 0, %s55
      %s72 = sphi 0, %s56
      %s76 = sphi 0, %s76
      %s78 = sphi 0, %s76
      %s79 = sphi 0, %s78
      %s93 = sphi 0, %s79
      %s97 = sphi 0, %s97
      %s99 = sphi 0, %s97
      %s100 = sphi 0, %s99
      %s114 = sphi 0, %s100
      %s118 = sphi 0, %s118
      %s120 = sphi 0, %s118
      %s121 = sphi 0, %s120
      %s135 = sphi 0, %s121
      %s141 = sphi 0, %s143
      %s144 = sphi 0, %s141
      %s145 = sphi 0, %s144
      %s161 = sphi 0, %s145
    $region4: #{tpu_custom_call.1} parent=1 // loop_header_branch
      %19 = sbr.rel (%p17) target = $region8
    $region5: #{tpu_custom_call.1} parent=1 // loop_body
      %s21 = ssub.s32 %s16, 1
      %s22 = ssub.s32 %s16, 2
      %s23 = sadd.s32 %s16, 1
      %s24 = ssub.s32 %s16, %s23
      %p25 = scmp.eq.s32.totalorder %s24, 0
      %s27 = sadd.s32 %s26, 1
      %s28 = scalar_select %p25, %s26, %s27
      %p31 = pneg %p25
      %p32 = scmp.eq.s32.totalorder %s16, 3
      %p33 = por %p31, %p32
      %p34 = scmp.ne.s32.totalorder %s26, %s29
      %p35 = scmp.eq.s32.totalorder %s16, 0
      %p36 = por %p34, %p35
      %p37 = scmp.ne.s32.totalorder %s26, %s29
      %p38 = scmp.eq.s32.totalorder %s21, 3
      %p39 = por %p37, %p38
      %p40 = scmp.ne.s32.totalorder %s29, %s30
      %p41 = scmp.eq.s32.totalorder %s21, 0
      %p42 = por %p40, %p41
      %p43 = scmp.ne.s32.totalorder %s29, %s30
      %p44 = scmp.eq.s32.totalorder %s22, 3
      %p45 = por %p43, %p44
      %p47 = scmp.ne.s32.totalorder %s30, %s46
      %p48 = scmp.eq.s32.totalorder %s22, 0
      %p49 = por %p47, %p48
      %s50 = ssub.s32 %s16, %s23
      %p51 = scmp.eq.s32.totalorder %s50, 0
      %s53 = sadd.s32 %s52, 1
      %s54 = scalar_select %p51, %s52, %s53
      %p57 = pneg %p51
      %p58 = scmp.eq.s32.totalorder %s16, 3
      %p59 = por %p57, %p58
      %p60 = scmp.ne.s32.totalorder %s52, %s55
      %p61 = scmp.eq.s32.totalorder %s16, 0
      %p62 = por %p60, %p61
      %p63 = scmp.ne.s32.totalorder %s52, %s55
      %p64 = scmp.eq.s32.totalorder %s21, 3
      %p65 = por %p63, %p64
      %p66 = scmp.ne.s32.totalorder %s55, %s56
      %p67 = scmp.eq.s32.totalorder %s21, 0
      %p68 = por %p66, %p67
      %p69 = scmp.ne.s32.totalorder %s55, %s56
      %p70 = scmp.eq.s32.totalorder %s22, 3
      %p71 = por %p69, %p70
      %p73 = scmp.ne.s32.totalorder %s56, %s72
      %p74 = scmp.eq.s32.totalorder %s22, 0
      %p75 = por %p73, %p74
      %s77 = sadd.s32 %s76, 1
      %p80 = scmp.eq.s32.totalorder %s16, 3
      %p81 = scmp.ne.s32.totalorder %s76, %s78
      %p82 = scmp.eq.s32.totalorder %s16, 0
      %p83 = por %p81, %p82
      %p84 = scmp.ne.s32.totalorder %s76, %s78
      %p85 = scmp.eq.s32.totalorder %s21, 3
      %p86 = por %p84, %p85
      %p87 = scmp.ne.s32.totalorder %s78, %s79
      %p88 = scmp.eq.s32.totalorder %s21, 0
      %p89 = por %p87, %p88
      %p90 = scmp.ne.s32.totalorder %s78, %s79
      %p91 = scmp.eq.s32.totalorder %s22, 3
      %p92 = por %p90, %p91
      %p94 = scmp.ne.s32.totalorder %s79, %s93
      %p95 = scmp.eq.s32.totalorder %s22, 0
      %p96 = por %p94, %p95
      %s98 = sadd.s32 %s97, 1
      %p101 = scmp.eq.s32.totalorder %s16, 3
      %p102 = scmp.ne.s32.totalorder %s97, %s99
      %p103 = scmp.eq.s32.totalorder %s16, 0
      %p104 = por %p102, %p103
      %p105 = scmp.ne.s32.totalorder %s97, %s99
      %p106 = scmp.eq.s32.totalorder %s21, 3
      %p107 = por %p105, %p106
      %p108 = scmp.ne.s32.totalorder %s99, %s100
      %p109 = scmp.eq.s32.totalorder %s21, 0
      %p110 = por %p108, %p109
      %p111 = scmp.ne.s32.totalorder %s99, %s100
      %p112 = scmp.eq.s32.totalorder %s22, 3
      %p113 = por %p111, %p112
      %p115 = scmp.ne.s32.totalorder %s100, %s114
      %p116 = scmp.eq.s32.totalorder %s22, 0
      %p117 = por %p115, %p116
      %s119 = sadd.s32 %s118, 1
      %p122 = scmp.eq.s32.totalorder %s16, 3
      %p123 = scmp.ne.s32.totalorder %s118, %s120
      %p124 = scmp.eq.s32.totalorder %s16, 0
      %p125 = por %p123, %p124
      %p126 = scmp.ne.s32.totalorder %s118, %s120
      %p127 = scmp.eq.s32.totalorder %s21, 3
      %p128 = por %p126, %p127
      %p129 = scmp.ne.s32.totalorder %s120, %s121
      %p130 = scmp.eq.s32.totalorder %s21, 0
      %p131 = por %p129, %p130
      %p132 = scmp.ne.s32.totalorder %s120, %s121
      %p133 = scmp.eq.s32.totalorder %s22, 3
      %p134 = por %p132, %p133
      %p136 = scmp.ne.s32.totalorder %s121, %s135
      %p137 = scmp.eq.s32.totalorder %s22, 0
      %p138 = por %p136, %p137
      %s139 = ssub.s32 %s16, %s23
      %p140 = scmp.eq.s32.totalorder %s139, 0
      %s142 = sadd.s32 %s141, 1
      %s143 = scalar_select %p140, %s141, %s142
      %p146 = pneg %p140
      %p147 = scmp.eq.s32.totalorder %s16, 3
      %p148 = por %p146, %p147
      %p149 = scmp.ne.s32.totalorder %s141, %s144
      %p150 = scmp.eq.s32.totalorder %s16, 0
      %p151 = por %p149, %p150
      %p152 = scmp.ne.s32.totalorder %s141, %s144
      %p153 = scmp.eq.s32.totalorder %s21, 3
      %p154 = por %p152, %p153
      %p155 = scmp.ne.s32.totalorder %s144, %s145
      %p156 = scmp.eq.s32.totalorder %s21, 0
      %p157 = por %p155, %p156
      %p158 = scmp.ne.s32.totalorder %s144, %s145
      %p159 = scmp.eq.s32.totalorder %s22, 3
      %p160 = por %p158, %p159
      %p162 = scmp.ne.s32.totalorder %s145, %s161
      %p163 = scmp.eq.s32.totalorder %s22, 0
      %p164 = por %p162, %p163
      %p165 = scmp.le.s32.totalorder 1, %s16
      %p166 = scmp.lt.s32.totalorder %s16, 5
      %p167 = pnand %p165, %p166
      %p168 = pneg %p167
      // Predicated region
      $region9: #{tpu_custom_call.1} parent=5 // pred_check
        _
      $region10: #{tpu_custom_call.1} parent=5 // pred_check_branch
        %170 = sbr.rel (%p167) target = $region12
      $region11: #{tpu_custom_call.1} parent=5 // pred_region
        %s171 = ssub.s32 %s16, 1
        // Predicated region
        $region13: #{tpu_custom_call.1} parent=11 // pred_check
          %p172 = pneg %p89
        $region14: #{tpu_custom_call.1} parent=11 // pred_check_branch
          %174 = sbr.rel (%p172) target = $region16
        $region15: #{tpu_custom_call.1} parent=11 // pred_region
          %176 = vsyncadd [#allocation3], 0
          %s177 = sshll.u32 %s2, 4
          %s178 = int_to_ptr.hbm [resolvable:$true] %s177
          %s179 = sshll.u32 [#allocation2], 4
          %s180 = int_to_ptr.vmem [resolvable:$true] %s179
          %185 = dma.hbm_to_vmem [thread:$0]  %s178, 4352, %s180, [#allocation3], 64, 64, 4
        $region16: #{tpu_custom_call.1} parent=11 // pred_fallthru
          _
        // Predicated region
        $region17: #{tpu_custom_call.1} parent=11 // pred_check
          %p186 = pneg %p110
        $region18: #{tpu_custom_call.1} parent=11 // pred_check_branch
          %188 = sbr.rel (%p186) target = $region20
        $region19: #{tpu_custom_call.1} parent=11 // pred_region
          %190 = vsyncadd [#allocation6], 0
          %s191 = sshll.u32 %s3, 4
          %s192 = int_to_ptr.hbm [resolvable:$true] %s191
          %s193 = sshll.u32 [#allocation5], 4
          %s194 = int_to_ptr.vmem [resolvable:$true] %s193
          %199 = dma.hbm_to_vmem [thread:$0]  %s192, 3072, %s194, [#allocation6], 192, 192, 12
        $region20: #{tpu_custom_call.1} parent=11 // pred_fallthru
          _
        // Predicated region
        $region21: #{tpu_custom_call.1} parent=11 // pred_check
          %p200 = pneg %p131
        $region22: #{tpu_custom_call.1} parent=11 // pred_check_branch
          %202 = sbr.rel (%p200) target = $region24
        $region23: #{tpu_custom_call.1} parent=11 // pred_region
          _
        $region24: #{tpu_custom_call.1} parent=11 // pred_fallthru
          _
      $region12: #{tpu_custom_call.1} parent=5 // pred_fallthru
        _
      %p203 = scmp.lt.s32.totalorder %s16, 4
      // Predicated region
      $region25: #{tpu_custom_call.1} parent=5 // pred_check
        %p204 = pneg %p203
      $region26: #{tpu_custom_call.1} parent=5 // pred_check_branch
        %206 = sbr.rel (%p204) target = $region28
      $region27: #{tpu_custom_call.1} parent=5 // pred_region
        // Predicated region
        $region29: #{tpu_custom_call.1} parent=27 // pred_check
          %p207 = pneg %p36
        $region30: #{tpu_custom_call.1} parent=27 // pred_check_branch
          %209 = sbr.rel (%p207) target = $region32
        $region31: #{tpu_custom_call.1} parent=27 // pred_region
          %s210 = smul.u32 16, %s16
          %p211 = scmp.lt.s32.totalorder %s210, 63
          %s212 = scalar_select %p211, %s210, 63
          %s213 = smul.addr %s212, 8
          %s214 = scalar_lea.vmem %s0, %s213
          %s215 = smul.u32 16, %s16
        $region32: #{tpu_custom_call.1} parent=27 // pred_fallthru
          _
        // Predicated region
        $region33: #{tpu_custom_call.1} parent=27 // pred_check
          %p216 = pneg %p62
        $region34: #{tpu_custom_call.1} parent=27 // pred_check_branch
          %218 = sbr.rel (%p216) target = $region36
        $region35: #{tpu_custom_call.1} parent=27 // pred_region
          %s219 = smul.u32 16, %s16
          %p220 = scmp.lt.s32.totalorder %s219, 63
          %s221 = scalar_select %p220, %s219, 63
          %s222 = smul.addr %s221, 8
          %s223 = scalar_lea.vmem %s1, %s222
          %s224 = smul.u32 16, %s16
        $region36: #{tpu_custom_call.1} parent=27 // pred_fallthru
          _
      $region28: #{tpu_custom_call.1} parent=5 // pred_fallthru
        _
      %p225 = scmp.le.s32.totalorder 1, %s16
      %p226 = scmp.lt.s32.totalorder %s16, 5
      %p227 = pnand %p225, %p226
      %p228 = pneg %p227
      // Predicated region
      $region37: #{tpu_custom_call.1} parent=5 // pred_check
        _
      $region38: #{tpu_custom_call.1} parent=5 // pred_check_branch
        %230 = sbr.rel (%p227) target = $region40
      $region39: #{tpu_custom_call.1} parent=5 // pred_region
        %s231 = ssub.s32 %s16, 1
        // Predicated region
        $region41: #{tpu_custom_call.1} parent=39 // pred_check
          %p232 = pneg %p89
        $region42: #{tpu_custom_call.1} parent=39 // pred_check_branch
          %234 = sbr.rel (%p232) target = $region44
        $region43: #{tpu_custom_call.1} parent=39 // pred_region
          %236 = dma.done [#allocation3], 4352
        $region44: #{tpu_custom_call.1} parent=39 // pred_fallthru
          _
        // Predicated region
        $region45: #{tpu_custom_call.1} parent=39 // pred_check
          %p237 = pneg %p110
        $region46: #{tpu_custom_call.1} parent=39 // pred_check_branch
          %239 = sbr.rel (%p237) target = $region48
        $region47: #{tpu_custom_call.1} parent=39 // pred_region
          %241 = dma.done [#allocation6], 3072
        $region48: #{tpu_custom_call.1} parent=39 // pred_fallthru
          _
        %s242 = smul.u32 16, %s21
        %p243 = scmp.lt.s32.totalorder %s242, 63
        %s244 = scalar_select %p243, %s242, 63
        %s245 = smul.addr %s244, 8
        %s246 = scalar_lea.vmem %s0, %s245
        %p247 = pneg %p42
        %p248 = pneg %p39
        %s249 = smul.u32 16, %s21
        %p250 = scmp.lt.s32.totalorder %s249, 63
        %s251 = scalar_select %p250, %s249, 63
        %s252 = smul.addr %s251, 8
        %s253 = scalar_lea.vmem %s1, %s252
        %p254 = pneg %p68
        %p255 = pneg %p65
        %p256 = pneg %p89
        %p257 = pneg %p86
        %p258 = pneg %p110
        %p259 = pneg %p107
        %p260 = pneg %p131
        %p261 = pneg %p128
        %p262 = pneg %p157
        %p263 = pneg %p154
        %s264 = sand.u32 %s144, 1
        %s265 = scalar_lea.sflag [#allocation4], %s264
        %s266 = sand.u32 %s144, 1
        %s267 = smul.addr %s266, 128
        %s268 = scalar_lea.vmem [#allocation7], %s267
        %s269 = smul.u32 16, %s21
        %p270 = scmp.lt.s32.totalorder %s269, 63
        %s271 = scalar_select %p270, %s269, 63
        %s272 = smul.addr %s271, 8
        %s273 = scalar_lea.vmem %s0, %s272
        %s274 = smul.u32 16, %s21
        %s275 = smul.u32 16, %s21
        %p276 = scmp.lt.s32.totalorder %s275, 63
        %s277 = scalar_select %p276, %s275, 63
        %s278 = smul.addr %s277, 8
        %s279 = scalar_lea.vmem %s1, %s278
        %s280 = smul.u32 16, %s21
        %s281 = smul.u32 16, %s21
        %v283 = vld [vmem:[%s273] sm:$0xff]
        %v284 = vld [vmem:[%s273 + $0x8] sm:$0xff]
        %v285 = vld [vmem:[%s273 + $0x10] sm:$0xff]
        %v286 = vld [vmem:[%s273 + $0x18] sm:$0xff]
        %v287 = vld [vmem:[%s273 + $0x20] sm:$0xff]
        %v288 = vld [vmem:[%s273 + $0x28] sm:$0xff]
        %v289 = vld [vmem:[%s273 + $0x30] sm:$0xff]
        %v290 = vld [vmem:[%s273 + $0x38] sm:$0xff]
        %v291 = vld [vmem:[%s273 + $0x40] sm:$0xff]
        %v292 = vld [vmem:[%s273 + $0x48] sm:$0xff]
        %v293 = vld [vmem:[%s273 + $0x50] sm:$0xff]
        %v294 = vld [vmem:[%s273 + $0x58] sm:$0xff]
        %v295 = vld [vmem:[%s273 + $0x60] sm:$0xff]
        %v296 = vld [vmem:[%s273 + $0x68] sm:$0xff]
        %v297 = vld [vmem:[%s273 + $0x70] sm:$0xff]
        %v298 = vld [vmem:[%s273 + $0x78] sm:$0xff]
        %v299 = vld [vmem:[#allocation2] sm:$0xf]
        %v300 = vld [vmem:[#allocation2 + $0x4] sm:$0xf]
        %v301 = vld [vmem:[#allocation2 + $0x8] sm:$0xf]
        %v302 = vld [vmem:[#allocation2 + $0xc] sm:$0xf]
        %v303 = vld [vmem:[#allocation2 + $0x10] sm:$0xf]
        %v304 = vld [vmem:[#allocation2 + $0x14] sm:$0xf]
        %v305 = vld [vmem:[#allocation2 + $0x18] sm:$0xf]
        %v306 = vld [vmem:[#allocation2 + $0x1c] sm:$0xf]
        %v307 = vld [vmem:[#allocation2 + $0x20] sm:$0xf]
        %v308 = vld [vmem:[#allocation2 + $0x24] sm:$0xf]
        %v309 = vld [vmem:[#allocation2 + $0x28] sm:$0xf]
        %v310 = vld [vmem:[#allocation2 + $0x2c] sm:$0xf]
        %v311 = vld [vmem:[#allocation2 + $0x30] sm:$0xf]
        %v312 = vld [vmem:[#allocation2 + $0x34] sm:$0xf]
        %v313 = vld [vmem:[#allocation2 + $0x38] sm:$0xf]
        %v314 = vld [vmem:[#allocation2 + $0x3c] sm:$0xf]
        %v315 = vld [vmem:[#allocation2 + $0x40] sm:$0xf]
        %v316 = vld [vmem:[#allocation2 + $0x44] sm:$0xf]
        %v317 = vld [vmem:[#allocation2 + $0x48] sm:$0xf]
        %v318 = vld [vmem:[#allocation2 + $0x4c] sm:$0xf]
        %v319 = vld [vmem:[#allocation2 + $0x50] sm:$0xf]
        %v320 = vld [vmem:[#allocation2 + $0x54] sm:$0xf]
        %v321 = vld [vmem:[#allocation2 + $0x58] sm:$0xf]
        %v322 = vld [vmem:[#allocation2 + $0x5c] sm:$0xf]
        %v323 = vld [vmem:[#allocation2 + $0x60] sm:$0xf]
        %v324 = vld [vmem:[#allocation2 + $0x64] sm:$0xf]
        %v325 = vld [vmem:[#allocation2 + $0x68] sm:$0xf]
        %v326 = vld [vmem:[#allocation2 + $0x6c] sm:$0xf]
        %v327 = vld [vmem:[#allocation2 + $0x70] sm:$0xf]
        %v328 = vld [vmem:[#allocation2 + $0x74] sm:$0xf]
        %v329 = vld [vmem:[#allocation2 + $0x78] sm:$0xf]
        %v330 = vld [vmem:[#allocation2 + $0x7c] sm:$0xf]
        %v331 = vld [vmem:[#allocation2 + $0x80] sm:$0xf]
        %v332 = vld [vmem:[#allocation2 + $0x84] sm:$0xf]
        %v333 = vld [vmem:[#allocation2 + $0x88] sm:$0xf]
        %v334 = vld [vmem:[#allocation2 + $0x8c] sm:$0xf]
        %v335 = vld [vmem:[#allocation2 + $0x90] sm:$0xf]
        %v336 = vld [vmem:[#allocation2 + $0x94] sm:$0xf]
        %v337 = vld [vmem:[#allocation2 + $0x98] sm:$0xf]
        %v338 = vld [vmem:[#allocation2 + $0x9c] sm:$0xf]
        %v339 = vld [vmem:[#allocation2 + $0xa0] sm:$0xf]
        %v340 = vld [vmem:[#allocation2 + $0xa4] sm:$0xf]
        %v341 = vld [vmem:[#allocation2 + $0xa8] sm:$0xf]
        %v342 = vld [vmem:[#allocation2 + $0xac] sm:$0xf]
        %v343 = vld [vmem:[#allocation2 + $0xb0] sm:$0xf]
        %v344 = vld [vmem:[#allocation2 + $0xb4] sm:$0xf]
        %v345 = vld [vmem:[#allocation2 + $0xb8] sm:$0xf]
        %v346 = vld [vmem:[#allocation2 + $0xbc] sm:$0xf]
        %v347 = vld [vmem:[#allocation2 + $0xc0] sm:$0xf]
        %v348 = vld [vmem:[#allocation2 + $0xc4] sm:$0xf]
        %v349 = vld [vmem:[#allocation2 + $0xc8] sm:$0xf]
        %v350 = vld [vmem:[#allocation2 + $0xcc] sm:$0xf]
        %v351 = vld [vmem:[#allocation2 + $0xd0] sm:$0xf]
        %v352 = vld [vmem:[#allocation2 + $0xd4] sm:$0xf]
        %v353 = vld [vmem:[#allocation2 + $0xd8] sm:$0xf]
        %v354 = vld [vmem:[#allocation2 + $0xdc] sm:$0xf]
        %v355 = vld [vmem:[#allocation2 + $0xe0] sm:$0xf]
        %v356 = vld [vmem:[#allocation2 + $0xe4] sm:$0xf]
        %v357 = vld [vmem:[#allocation2 + $0xe8] sm:$0xf]
        %v358 = vld [vmem:[#allocation2 + $0xec] sm:$0xf]
        %v359 = vld [vmem:[#allocation2 + $0xf0] sm:$0xf]
        %v360 = vld [vmem:[#allocation2 + $0xf4] sm:$0xf]
        %v361 = vld [vmem:[#allocation2 + $0xf8] sm:$0xf]
        %v362 = vld [vmem:[#allocation2 + $0xfc] sm:$0xf]
        %v363 = vld [vmem:[#allocation2 + $0x100] sm:$0xf]
        %v364 = vld [vmem:[#allocation2 + $0x104] sm:$0xf]
        %v365 = vld [vmem:[#allocation2 + $0x108] sm:$0xf]
        %v366 = vld [vmem:[#allocation2 + $0x10c] sm:$0xf]
        %v367 = vld [vmem:[%s4] ss:$8 sm:$0x7]
        %s368 = scalar_lea.vmem %s4, 1
        %v369 = vld [vmem:[%s368] ss:$8 sm:$0x7]
        %s370 = scalar_lea.vmem %s4, 2
        %v371 = vld [vmem:[%s370] ss:$8 sm:$0x7]
        %v372 = vld [vmem:[%s4 + $0x3] ss:$0 sm:$0xff]
        %v373 = vld [vmem:[%s4 + $0x4] ss:$0 sm:$0xff]
        %v374 = vld [vmem:[%s4 + $0x5] ss:$0 sm:$0xff]
        %v375 = vld [vmem:[%s4 + $0x6] ss:$0 sm:$0xff]
        %v376 = vpack.c.bf16 %v284, %v283
        %v377 = vpack.c.bf16 %v286, %v285
        %v378 = vpack.c.bf16 %v288, %v287
        %v379 = vpack.c.bf16 %v290, %v289
        %v380 = vpack.c.bf16 %v292, %v291
        %v381 = vpack.c.bf16 %v294, %v293
        %v382 = vpack.c.bf16 %v296, %v295
        %v383 = vpack.c.bf16 %v298, %v297
        %v388 = vunpack.c.l.b16 %v299
        %v389 = vunpack.c.l.b16 %v300
        %v390 = vunpack.c.l.b16 %v301
        %v391 = vunpack.c.l.b16 %v302
        %v392 = vpack.c.b16 %v389, %v388
        %v393 = vpack.c.b16 %v391, %v390
        %vm396 = vcmask 261120
        %v398 = vsel %vm396, %v376, 0
        %v401 = vsel %vm396, %v377, 0
        %v404 = vsel %vm396, %v378, 0
        %v407 = vsel %vm396, %v379, 0
        %v410 = vsel %vm396, %v380, 0
        %v413 = vsel %vm396, %v381, 0
        %v416 = vsel %vm396, %v382, 0
        %v419 = vsel %vm396, %v383, 0
        %421 = vmatpush.bf16.msra.mxu0 0
        %422 = vmatpush.bf16.msra.mxu0 0
        %423 = vmatpush.bf16.msra.mxu0 0
        %424 = vmatpush.bf16.msra.mxu0 0
        %425 = vmatpush.bf16.msra.mxu0 0
        %426 = vmatpush.bf16.msra.mxu0 0
        %427 = vmatpush.bf16.msra.mxu0 %v393
        %428 = vmatpush.bf16.msra.mxu0 %v392
        %429 = vmatmul.bf16.gmra.mxu0 %v398
        %v430 = vpop.f32.mrf.mxu0
        %v431 = vadd.f32 0.0, %v430
        %v432 = vpop.f32.mrf.mxu0
        %v433 = vadd.f32 0.0, %v432
        %434 = vmatmul.bf16.gmra.mxu0 %v401
        %v435 = vpop.f32.mrf.mxu0
        %v436 = vadd.f32 0.0, %v435
        %v437 = vpop.f32.mrf.mxu0
        %v438 = vadd.f32 0.0, %v437
        %439 = vmatmul.bf16.gmra.mxu0 %v404
        %v440 = vpop.f32.mrf.mxu0
        %v441 = vadd.f32 0.0, %v440
        %v442 = vpop.f32.mrf.mxu0
        %v443 = vadd.f32 0.0, %v442
        %444 = vmatmul.bf16.gmra.mxu0 %v407
        %v445 = vpop.f32.mrf.mxu0
        %v446 = vadd.f32 0.0, %v445
        %v447 = vpop.f32.mrf.mxu0
        %v448 = vadd.f32 0.0, %v447
        %449 = vmatmul.bf16.gmra.mxu0 %v410
        %v450 = vpop.f32.mrf.mxu0
        %v451 = vadd.f32 0.0, %v450
        %v452 = vpop.f32.mrf.mxu0
        %v453 = vadd.f32 0.0, %v452
        %454 = vmatmul.bf16.gmra.mxu0 %v413
        %v455 = vpop.f32.mrf.mxu0
        %v456 = vadd.f32 0.0, %v455
        %v457 = vpop.f32.mrf.mxu0
        %v458 = vadd.f32 0.0, %v457
        %459 = vmatmul.bf16.gmra.mxu0 %v416
        %v460 = vpop.f32.mrf.mxu0
        %v461 = vadd.f32 0.0, %v460
        %v462 = vpop.f32.mrf.mxu0
        %v463 = vadd.f32 0.0, %v462
        %464 = vmatmul.bf16.gmra.mxu0 %v419
        %v465 = vpop.f32.mrf.mxu0
        %v466 = vadd.f32 0.0, %v465
        %v467 = vpop.f32.mrf.mxu0
        %v468 = vadd.f32 0.0, %v467
        %469 = vdwg.mxu0
        %v470 = vmul.f32 %v431, %v373
        %v471 = vmul.f32 %v433, %v373
        %v472 = vmul.f32 %v436, %v373
        %v473 = vmul.f32 %v438, %v373
        %v474 = vmul.f32 %v441, %v373
        %v475 = vmul.f32 %v443, %v373
        %v476 = vmul.f32 %v446, %v373
        %v477 = vmul.f32 %v448, %v373
        %v478 = vmul.f32 %v451, %v373
        %v479 = vmul.f32 %v453, %v373
        %v480 = vmul.f32 %v456, %v373
        %v481 = vmul.f32 %v458, %v373
        %v482 = vmul.f32 %v461, %v373
        %v483 = vmul.f32 %v463, %v373
        %v484 = vmul.f32 %v466, %v373
        %v485 = vmul.f32 %v468, %v373
        %486 = vadd.xlane.f32.xlu0 %v470
        %v487 = vpop.xlane.xlu0 %486
        %488 = vadd.xlane.f32.xlu0 %v471
        %v489 = vpop.xlane.xlu0 %488
        %490 = vadd.xlane.f32.xlu0 %v472
        %v491 = vpop.xlane.xlu0 %490
        %492 = vadd.xlane.f32.xlu0 %v473
        %v493 = vpop.xlane.xlu0 %492
        %494 = vadd.xlane.f32.xlu0 %v474
        %v495 = vpop.xlane.xlu0 %494
        %496 = vadd.xlane.f32.xlu0 %v475
        %v497 = vpop.xlane.xlu0 %496
        %498 = vadd.xlane.f32.xlu0 %v476
        %v499 = vpop.xlane.xlu0 %498
        %500 = vadd.xlane.f32.xlu0 %v477
        %v501 = vpop.xlane.xlu0 %500
        %502 = vadd.xlane.f32.xlu0 %v478
        %v503 = vpop.xlane.xlu0 %502
        %504 = vadd.xlane.f32.xlu0 %v479
        %v505 = vpop.xlane.xlu0 %504
        %506 = vadd.xlane.f32.xlu0 %v480
        %v507 = vpop.xlane.xlu0 %506
        %508 = vadd.xlane.f32.xlu0 %v481
        %v509 = vpop.xlane.xlu0 %508
        %510 = vadd.xlane.f32.xlu0 %v482
        %v511 = vpop.xlane.xlu0 %510
        %512 = vadd.xlane.f32.xlu0 %v483
        %v513 = vpop.xlane.xlu0 %512
        %514 = vadd.xlane.f32.xlu0 %v484
        %v515 = vpop.xlane.xlu0 %514
        %516 = vadd.xlane.f32.xlu0 %v485
        %v517 = vpop.xlane.xlu0 %516
        %518 = vmatpush.xpose.msra.mxu0 %v468
        %519 = vmatpush.xpose.msra.mxu0 %v466
        %520 = vmatpush.xpose.msra.mxu0 %v463
        %521 = vmatpush.xpose.msra.mxu0 %v461
        %522 = vmatpush.xpose.msra.mxu0 %v458
        %523 = vmatpush.xpose.msra.mxu0 %v456
        %524 = vmatpush.xpose.msra.mxu0 %v453
        %525 = vmatpush.xpose.msra.mxu0 %v451
        %526 = vmatpush.xpose.msra.mxu0 %v448
        %527 = vmatpush.xpose.msra.mxu0 %v446
        %528 = vmatpush.xpose.msra.mxu0 %v443
        %529 = vmatpush.xpose.msra.mxu0 %v441
        %530 = vmatpush.xpose.msra.mxu0 %v438
        %531 = vmatpush.xpose.msra.mxu0 %v436
        %532 = vmatpush.xpose.msra.mxu0 %v433
        %533 = vmatpush.xpose.msra.mxu0 %v431
        %534 = vmatmul.f32.gmra.mxu0 %v372
        %v535 = vpop.f32.mrf.mxu0
        %v536 = vadd.f32 0.0, %v535
        %537 = vdwg.mxu0
        %v538 = vperm.slane %v536, 0
        %v539 = vadd.f32 %v487, %v538
        %v540 = vadd.f32 %v489, %v538
        %v541 = vadd.f32 %v491, %v538
        %v542 = vadd.f32 %v493, %v538
        %v543 = vadd.f32 %v495, %v538
        %v544 = vadd.f32 %v497, %v538
        %v545 = vadd.f32 %v499, %v538
        %v546 = vadd.f32 %v501, %v538
        %v547 = vadd.f32 %v503, %v538
        %v548 = vadd.f32 %v505, %v538
        %v549 = vadd.f32 %v507, %v538
        %v550 = vadd.f32 %v509, %v538
        %v551 = vadd.f32 %v511, %v538
        %v552 = vadd.f32 %v513, %v538
        %v553 = vadd.f32 %v515, %v538
        %v554 = vadd.f32 %v517, %v538
        %v555 = vmul.f32 %v539, 0.2
        %v556 = vmul.f32 %v540, 0.2
        %v557 = vmul.f32 %v541, 0.2
        %v558 = vmul.f32 %v542, 0.2
        %v559 = vmul.f32 %v543, 0.2
        %v560 = vmul.f32 %v544, 0.2
        %v561 = vmul.f32 %v545, 0.2
        %v562 = vmul.f32 %v546, 0.2
        %v563 = vmul.f32 %v547, 0.2
        %v564 = vmul.f32 %v548, 0.2
        %v565 = vmul.f32 %v549, 0.2
        %v566 = vmul.f32 %v550, 0.2
        %v567 = vmul.f32 %v551, 0.2
        %v568 = vmul.f32 %v552, 0.2
        %v569 = vmul.f32 %v553, 0.2
        %v570 = vmul.f32 %v554, 0.2
        %v571 = vmax.f32 %v539, %v555
        %v572 = vmax.f32 %v540, %v556
        %v573 = vmax.f32 %v541, %v557
        %v574 = vmax.f32 %v542, %v558
        %v575 = vmax.f32 %v543, %v559
        %v576 = vmax.f32 %v544, %v560
        %v577 = vmax.f32 %v545, %v561
        %v578 = vmax.f32 %v546, %v562
        %v579 = vmax.f32 %v547, %v563
        %v580 = vmax.f32 %v548, %v564
        %v581 = vmax.f32 %v549, %v565
        %v582 = vmax.f32 %v550, %v566
        %v583 = vmax.f32 %v551, %v567
        %v584 = vmax.f32 %v552, %v568
        %v585 = vmax.f32 %v553, %v569
        %v586 = vmax.f32 %v554, %v570
        %v587 = vld [vmem:[%s279] sm:$0xff]
        %v588 = vld [vmem:[%s279 + $0x8] sm:$0xff]
        %v589 = vld [vmem:[%s279 + $0x10] sm:$0xff]
        %v590 = vld [vmem:[%s279 + $0x18] sm:$0xff]
        %v591 = vld [vmem:[%s279 + $0x20] sm:$0xff]
        %v592 = vld [vmem:[%s279 + $0x28] sm:$0xff]
        %v593 = vld [vmem:[%s279 + $0x30] sm:$0xff]
        %v594 = vld [vmem:[%s279 + $0x38] sm:$0xff]
        %v595 = vld [vmem:[%s279 + $0x40] sm:$0xff]
        %v596 = vld [vmem:[%s279 + $0x48] sm:$0xff]
        %v597 = vld [vmem:[%s279 + $0x50] sm:$0xff]
        %v598 = vld [vmem:[%s279 + $0x58] sm:$0xff]
        %v599 = vld [vmem:[%s279 + $0x60] sm:$0xff]
        %v600 = vld [vmem:[%s279 + $0x68] sm:$0xff]
        %v601 = vld [vmem:[%s279 + $0x70] sm:$0xff]
        %v602 = vld [vmem:[%s279 + $0x78] sm:$0xff]
        %603 = vmax.xlane.f32.xlu0 %v571
        %v604 = vpop.xlane.xlu0 %603
        %605 = vmax.xlane.f32.xlu0 %v572
        %v606 = vpop.xlane.xlu0 %605
        %607 = vmax.xlane.f32.xlu0 %v573
        %v608 = vpop.xlane.xlu0 %607
        %609 = vmax.xlane.f32.xlu0 %v574
        %v610 = vpop.xlane.xlu0 %609
        %611 = vmax.xlane.f32.xlu0 %v575
        %v612 = vpop.xlane.xlu0 %611
        %613 = vmax.xlane.f32.xlu0 %v576
        %v614 = vpop.xlane.xlu0 %613
        %615 = vmax.xlane.f32.xlu0 %v577
        %v616 = vpop.xlane.xlu0 %615
        %617 = vmax.xlane.f32.xlu0 %v578
        %v618 = vpop.xlane.xlu0 %617
        %619 = vmax.xlane.f32.xlu0 %v579
        %v620 = vpop.xlane.xlu0 %619
        %621 = vmax.xlane.f32.xlu0 %v580
        %v622 = vpop.xlane.xlu0 %621
        %623 = vmax.xlane.f32.xlu0 %v581
        %v624 = vpop.xlane.xlu0 %623
        %625 = vmax.xlane.f32.xlu0 %v582
        %v626 = vpop.xlane.xlu0 %625
        %627 = vmax.xlane.f32.xlu0 %v583
        %v628 = vpop.xlane.xlu0 %627
        %629 = vmax.xlane.f32.xlu0 %v584
        %v630 = vpop.xlane.xlu0 %629
        %631 = vmax.xlane.f32.xlu0 %v585
        %v632 = vpop.xlane.xlu0 %631
        %633 = vmax.xlane.f32.xlu0 %v586
        %v634 = vpop.xlane.xlu0 %633
        %v635 = vsub.f32 %v571, %v604
        %v636 = vsub.f32 %v572, %v606
        %v637 = vsub.f32 %v573, %v608
        %v638 = vsub.f32 %v574, %v610
        %v639 = vsub.f32 %v575, %v612
        %v640 = vsub.f32 %v576, %v614
        %v641 = vsub.f32 %v577, %v616
        %v642 = vsub.f32 %v578, %v618
        %v643 = vsub.f32 %v579, %v620
        %v644 = vsub.f32 %v580, %v622
        %v645 = vsub.f32 %v581, %v624
        %v646 = vsub.f32 %v582, %v626
        %v647 = vsub.f32 %v583, %v628
        %v648 = vsub.f32 %v584, %v630
        %v649 = vsub.f32 %v585, %v632
        %v650 = vsub.f32 %v586, %v634
        %v651 = vmul.f32 %v635, 1.442695
        %v652 = vpow.pop %v651
        %v653 = vmul.f32 %v636, 1.442695
        %v654 = vpow.pop %v653
        %v655 = vmul.f32 %v637, 1.442695
        %v656 = vpow.pop %v655
        %v657 = vmul.f32 %v638, 1.442695
        %v658 = vpow.pop %v657
        %v659 = vmul.f32 %v639, 1.442695
        %v660 = vpow.pop %v659
        %v661 = vmul.f32 %v640, 1.442695
        %v662 = vpow.pop %v661
        %v663 = vmul.f32 %v641, 1.442695
        %v664 = vpow.pop %v663
        %v665 = vmul.f32 %v642, 1.442695
        %v666 = vpow.pop %v665
        %v667 = vmul.f32 %v643, 1.442695
        %v668 = vpow.pop %v667
        %v669 = vmul.f32 %v644, 1.442695
        %v670 = vpow.pop %v669
        %v671 = vmul.f32 %v645, 1.442695
        %v672 = vpow.pop %v671
        %v673 = vmul.f32 %v646, 1.442695
        %v674 = vpow.pop %v673
        %v675 = vmul.f32 %v647, 1.442695
        %v676 = vpow.pop %v675
        %v677 = vmul.f32 %v648, 1.442695
        %v678 = vpow.pop %v677
        %v679 = vmul.f32 %v649, 1.442695
        %v680 = vpow.pop %v679
        %v681 = vmul.f32 %v650, 1.442695
        %v682 = vpow.pop %v681
        %v683 = vmul.f32 %v652, %v587
        %v684 = vmul.f32 %v654, %v588
        %v685 = vmul.f32 %v656, %v589
        %v686 = vmul.f32 %v658, %v590
        %v687 = vmul.f32 %v660, %v591
        %v688 = vmul.f32 %v662, %v592
        %v689 = vmul.f32 %v664, %v593
        %v690 = vmul.f32 %v666, %v594
        %v691 = vmul.f32 %v668, %v595
        %v692 = vmul.f32 %v670, %v596
        %v693 = vmul.f32 %v672, %v597
        %v694 = vmul.f32 %v674, %v598
        %v695 = vmul.f32 %v676, %v599
        %v696 = vmul.f32 %v678, %v600
        %v697 = vmul.f32 %v680, %v601
        %v698 = vmul.f32 %v682, %v602
        %699 = vadd.xlane.f32.xlu0 %v683
        %v700 = vpop.xlane.xlu0 %699
        %701 = vadd.xlane.f32.xlu0 %v684
        %v702 = vpop.xlane.xlu0 %701
        %703 = vadd.xlane.f32.xlu0 %v685
        %v704 = vpop.xlane.xlu0 %703
        %705 = vadd.xlane.f32.xlu0 %v686
        %v706 = vpop.xlane.xlu0 %705
        %707 = vadd.xlane.f32.xlu0 %v687
        %v708 = vpop.xlane.xlu0 %707
        %709 = vadd.xlane.f32.xlu0 %v688
        %v710 = vpop.xlane.xlu0 %709
        %711 = vadd.xlane.f32.xlu0 %v689
        %v712 = vpop.xlane.xlu0 %711
        %713 = vadd.xlane.f32.xlu0 %v690
        %v714 = vpop.xlane.xlu0 %713
        %715 = vadd.xlane.f32.xlu0 %v691
        %v716 = vpop.xlane.xlu0 %715
        %717 = vadd.xlane.f32.xlu0 %v692
        %v718 = vpop.xlane.xlu0 %717
        %719 = vadd.xlane.f32.xlu0 %v693
        %v720 = vpop.xlane.xlu0 %719
        %721 = vadd.xlane.f32.xlu0 %v694
        %v722 = vpop.xlane.xlu0 %721
        %723 = vadd.xlane.f32.xlu0 %v695
        %v724 = vpop.xlane.xlu0 %723
        %725 = vadd.xlane.f32.xlu0 %v696
        %v726 = vpop.xlane.xlu0 %725
        %727 = vadd.xlane.f32.xlu0 %v697
        %v728 = vpop.xlane.xlu0 %727
        %729 = vadd.xlane.f32.xlu0 %v698
        %v730 = vpop.xlane.xlu0 %729
        %v731 = vrcp.pop %v700
        %v732 = vrcp.pop %v702
        %v733 = vrcp.pop %v704
        %v734 = vrcp.pop %v706
        %v735 = vrcp.pop %v708
        %v736 = vrcp.pop %v710
        %v737 = vrcp.pop %v712
        %v738 = vrcp.pop %v714
        %v739 = vrcp.pop %v716
        %v740 = vrcp.pop %v718
        %v741 = vrcp.pop %v720
        %v742 = vrcp.pop %v722
        %v743 = vrcp.pop %v724
        %v744 = vrcp.pop %v726
        %v745 = vrcp.pop %v728
        %v746 = vrcp.pop %v730
        %v747 = vmul.f32 %v683, %v731
        %v748 = vmul.f32 %v684, %v732
        %v749 = vmul.f32 %v685, %v733
        %v750 = vmul.f32 %v686, %v734
        %v751 = vmul.f32 %v687, %v735
        %v752 = vmul.f32 %v688, %v736
        %v753 = vmul.f32 %v689, %v737
        %v754 = vmul.f32 %v690, %v738
        %v755 = vmul.f32 %v691, %v739
        %v756 = vmul.f32 %v692, %v740
        %v757 = vmul.f32 %v693, %v741
        %v758 = vmul.f32 %v694, %v742
        %v759 = vmul.f32 %v695, %v743
        %v760 = vmul.f32 %v696, %v744
        %v761 = vmul.f32 %v697, %v745
        %v762 = vmul.f32 %v698, %v746
        %v763 = vpack.c.bf16 %v748, %v747
        %v764 = vpack.c.bf16 %v750, %v749
        %v765 = vpack.c.bf16 %v752, %v751
        %v766 = vpack.c.bf16 %v754, %v753
        %v767 = vpack.c.bf16 %v756, %v755
        %v768 = vpack.c.bf16 %v758, %v757
        %v769 = vpack.c.bf16 %v760, %v759
        %v770 = vpack.c.bf16 %v762, %v761
        %v771 = vpack.c.bf16 %v433, %v431
        %v772 = vpack.c.bf16 %v438, %v436
        %v773 = vpack.c.bf16 %v443, %v441
        %v774 = vpack.c.bf16 %v448, %v446
        %v775 = vpack.c.bf16 %v453, %v451
        %v776 = vpack.c.bf16 %v458, %v456
        %v777 = vpack.c.bf16 %v463, %v461
        %v778 = vpack.c.bf16 %v468, %v466
        %779 = vmatpush.bf16.msra.mxu0 %v778
        %780 = vmatpush.bf16.msra.mxu0 %v777
        %781 = vmatpush.bf16.msra.mxu0 %v776
        %782 = vmatpush.bf16.msra.mxu0 %v775
        %783 = vmatpush.bf16.msra.mxu0 %v774
        %784 = vmatpush.bf16.msra.mxu0 %v773
        %785 = vmatpush.bf16.msra.mxu0 %v772
        %786 = vmatpush.bf16.msra.mxu0 %v771
        %787 = vmatmul.bf16.gmra.mxu0 %v763
        %v788 = vpop.f32.mrf.mxu0
        %v789 = vadd.f32 0.0, %v788
        %v790 = vpop.f32.mrf.mxu0
        %v791 = vadd.f32 0.0, %v790
        %792 = vmatmul.bf16.gmra.mxu0 %v764
        %v793 = vpop.f32.mrf.mxu0
        %v794 = vadd.f32 0.0, %v793
        %v795 = vpop.f32.mrf.mxu0
        %v796 = vadd.f32 0.0, %v795
        %797 = vmatmul.bf16.gmra.mxu0 %v765
        %v798 = vpop.f32.mrf.mxu0
        %v799 = vadd.f32 0.0, %v798
        %v800 = vpop.f32.mrf.mxu0
        %v801 = vadd.f32 0.0, %v800
        %802 = vmatmul.bf16.gmra.mxu0 %v766
        %v803 = vpop.f32.mrf.mxu0
        %v804 = vadd.f32 0.0, %v803
        %v805 = vpop.f32.mrf.mxu0
        %v806 = vadd.f32 0.0, %v805
        %807 = vmatmul.bf16.gmra.mxu0 %v767
        %v808 = vpop.f32.mrf.mxu0
        %v809 = vadd.f32 0.0, %v808
        %v810 = vpop.f32.mrf.mxu0
        %v811 = vadd.f32 0.0, %v810
        %812 = vmatmul.bf16.gmra.mxu0 %v768
        %v813 = vpop.f32.mrf.mxu0
        %v814 = vadd.f32 0.0, %v813
        %v815 = vpop.f32.mrf.mxu0
        %v816 = vadd.f32 0.0, %v815
        %817 = vmatmul.bf16.gmra.mxu0 %v769
        %v818 = vpop.f32.mrf.mxu0
        %v819 = vadd.f32 0.0, %v818
        %v820 = vpop.f32.mrf.mxu0
        %v821 = vadd.f32 0.0, %v820
        %822 = vmatmul.bf16.gmra.mxu0 %v770
        %v823 = vpop.f32.mrf.mxu0
        %v824 = vadd.f32 0.0, %v823
        %v825 = vpop.f32.mrf.mxu0
        %v826 = vadd.f32 0.0, %v825
        %827 = vdwg.mxu0
        %829 = vset.pattern.permute.xlu0 32
        %830 = vperm.xlu0 %829, %v283
        %v831 = vpop.permute.xlu0 %830
        %834 = vset.pattern.permute.xlu0 32
        %835 = vperm.xlu0 %834, %v284
        %v836 = vpop.permute.xlu0 %835
        %839 = vset.pattern.permute.xlu0 32
        %840 = vperm.xlu0 %839, %v285
        %v841 = vpop.permute.xlu0 %840
        %844 = vset.pattern.permute.xlu0 32
        %845 = vperm.xlu0 %844, %v286
        %v846 = vpop.permute.xlu0 %845
        %849 = vset.pattern.permute.xlu0 32
        %850 = vperm.xlu0 %849, %v287
        %v851 = vpop.permute.xlu0 %850
        %854 = vset.pattern.permute.xlu0 32
        %855 = vperm.xlu0 %854, %v288
        %v856 = vpop.permute.xlu0 %855
        %859 = vset.pattern.permute.xlu0 32
        %860 = vperm.xlu0 %859, %v289
        %v861 = vpop.permute.xlu0 %860
        %864 = vset.pattern.permute.xlu0 32
        %865 = vperm.xlu0 %864, %v290
        %v866 = vpop.permute.xlu0 %865
        %869 = vset.pattern.permute.xlu0 32
        %870 = vperm.xlu0 %869, %v291
        %v871 = vpop.permute.xlu0 %870
        %874 = vset.pattern.permute.xlu0 32
        %875 = vperm.xlu0 %874, %v292
        %v876 = vpop.permute.xlu0 %875
        %879 = vset.pattern.permute.xlu0 32
        %880 = vperm.xlu0 %879, %v293
        %v881 = vpop.permute.xlu0 %880
        %884 = vset.pattern.permute.xlu0 32
        %885 = vperm.xlu0 %884, %v294
        %v886 = vpop.permute.xlu0 %885
        %889 = vset.pattern.permute.xlu0 32
        %890 = vperm.xlu0 %889, %v295
        %v891 = vpop.permute.xlu0 %890
        %894 = vset.pattern.permute.xlu0 32
        %895 = vperm.xlu0 %894, %v296
        %v896 = vpop.permute.xlu0 %895
        %899 = vset.pattern.permute.xlu0 32
        %900 = vperm.xlu0 %899, %v297
        %v901 = vpop.permute.xlu0 %900
        %904 = vset.pattern.permute.xlu0 32
        %905 = vperm.xlu0 %904, %v298
        %v906 = vpop.permute.xlu0 %905
        %v909 = vperm.slane %v367, 0
        %v910 = vperm.slane %v367, 1
        %v911 = vperm.slane %v367, 2
        %v915 = vmul.f32 %v831, %v909
        %v916 = vmul.f32 %v831, %v910
        %v917 = vmul.f32 %v831, %v911
        %v918 = vmul.f32 %v836, %v909
        %v919 = vmul.f32 %v836, %v910
        %v920 = vmul.f32 %v836, %v911
        %v921 = vmul.f32 %v841, %v909
        %v922 = vmul.f32 %v841, %v910
        %v923 = vmul.f32 %v841, %v911
        %v924 = vmul.f32 %v846, %v909
        %v925 = vmul.f32 %v846, %v910
        %v926 = vmul.f32 %v846, %v911
        %v927 = vmul.f32 %v851, %v909
        %v928 = vmul.f32 %v851, %v910
        %v929 = vmul.f32 %v851, %v911
        %v930 = vmul.f32 %v856, %v909
        %v931 = vmul.f32 %v856, %v910
        %v932 = vmul.f32 %v856, %v911
        %v933 = vmul.f32 %v861, %v909
        %v934 = vmul.f32 %v861, %v910
        %v935 = vmul.f32 %v861, %v911
        %v936 = vmul.f32 %v866, %v909
        %v937 = vmul.f32 %v866, %v910
        %v938 = vmul.f32 %v866, %v911
        %v939 = vmul.f32 %v871, %v909
        %v940 = vmul.f32 %v871, %v910
        %v941 = vmul.f32 %v871, %v911
        %v942 = vmul.f32 %v876, %v909
        %v943 = vmul.f32 %v876, %v910
        %v944 = vmul.f32 %v876, %v911
        %v945 = vmul.f32 %v881, %v909
        %v946 = vmul.f32 %v881, %v910
        %v947 = vmul.f32 %v881, %v911
        %v948 = vmul.f32 %v886, %v909
        %v949 = vmul.f32 %v886, %v910
        %v950 = vmul.f32 %v886, %v911
        %v951 = vmul.f32 %v891, %v909
        %v952 = vmul.f32 %v891, %v910
        %v953 = vmul.f32 %v891, %v911
        %v954 = vmul.f32 %v896, %v909
        %v955 = vmul.f32 %v896, %v910
        %v956 = vmul.f32 %v896, %v911
        %v957 = vmul.f32 %v901, %v909
        %v958 = vmul.f32 %v901, %v910
        %v959 = vmul.f32 %v901, %v911
        %v960 = vmul.f32 %v906, %v909
        %v961 = vmul.f32 %v906, %v910
        %v962 = vmul.f32 %v906, %v911
        %963 = vset.pattern.permute.xlu0 33
        %964 = vperm.xlu0 %963, %v283
        %v965 = vpop.permute.xlu0 %964
        %967 = vset.pattern.permute.xlu0 33
        %968 = vperm.xlu0 %967, %v284
        %v969 = vpop.permute.xlu0 %968
        %971 = vset.pattern.permute.xlu0 33
        %972 = vperm.xlu0 %971, %v285
        %v973 = vpop.permute.xlu0 %972
        %975 = vset.pattern.permute.xlu0 33
        %976 = vperm.xlu0 %975, %v286
        %v977 = vpop.permute.xlu0 %976
        %979 = vset.pattern.permute.xlu0 33
        %980 = vperm.xlu0 %979, %v287
        %v981 = vpop.permute.xlu0 %980
        %983 = vset.pattern.permute.xlu0 33
        %984 = vperm.xlu0 %983, %v288
        %v985 = vpop.permute.xlu0 %984
        %987 = vset.pattern.permute.xlu0 33
        %988 = vperm.xlu0 %987, %v289
        %v989 = vpop.permute.xlu0 %988
        %991 = vset.pattern.permute.xlu0 33
        %992 = vperm.xlu0 %991, %v290
        %v993 = vpop.permute.xlu0 %992
        %995 = vset.pattern.permute.xlu0 33
        %996 = vperm.xlu0 %995, %v291
        %v997 = vpop.permute.xlu0 %996
        %999 = vset.pattern.permute.xlu0 33
        %1000 = vperm.xlu0 %999, %v292
        %v1001 = vpop.permute.xlu0 %1000
        %1003 = vset.pattern.permute.xlu0 33
        %1004 = vperm.xlu0 %1003, %v293
        %v1005 = vpop.permute.xlu0 %1004
        %1007 = vset.pattern.permute.xlu0 33
        %1008 = vperm.xlu0 %1007, %v294
        %v1009 = vpop.permute.xlu0 %1008
        %1011 = vset.pattern.permute.xlu0 33
        %1012 = vperm.xlu0 %1011, %v295
        %v1013 = vpop.permute.xlu0 %1012
        %1015 = vset.pattern.permute.xlu0 33
        %1016 = vperm.xlu0 %1015, %v296
        %v1017 = vpop.permute.xlu0 %1016
        %1019 = vset.pattern.permute.xlu0 33
        %1020 = vperm.xlu0 %1019, %v297
        %v1021 = vpop.permute.xlu0 %1020
        %1023 = vset.pattern.permute.xlu0 33
        %1024 = vperm.xlu0 %1023, %v298
        %v1025 = vpop.permute.xlu0 %1024
        %v1028 = vperm.slane %v369, 0
        %v1029 = vperm.slane %v369, 1
        %v1030 = vperm.slane %v369, 2
        %v1034 = vmul.f32 %v965, %v1028
        %v1035 = vmul.f32 %v965, %v1029
        %v1036 = vmul.f32 %v965, %v1030
        %v1037 = vmul.f32 %v969, %v1028
        %v1038 = vmul.f32 %v969, %v1029
        %v1039 = vmul.f32 %v969, %v1030
        %v1040 = vmul.f32 %v973, %v1028
        %v1041 = vmul.f32 %v973, %v1029
        %v1042 = vmul.f32 %v973, %v1030
        %v1043 = vmul.f32 %v977, %v1028
        %v1044 = vmul.f32 %v977, %v1029
        %v1045 = vmul.f32 %v977, %v1030
        %v1046 = vmul.f32 %v981, %v1028
        %v1047 = vmul.f32 %v981, %v1029
        %v1048 = vmul.f32 %v981, %v1030
        %v1049 = vmul.f32 %v985, %v1028
        %v1050 = vmul.f32 %v985, %v1029
        %v1051 = vmul.f32 %v985, %v1030
        %v1052 = vmul.f32 %v989, %v1028
        %v1053 = vmul.f32 %v989, %v1029
        %v1054 = vmul.f32 %v989, %v1030
        %v1055 = vmul.f32 %v993, %v1028
        %v1056 = vmul.f32 %v993, %v1029
        %v1057 = vmul.f32 %v993, %v1030
        %v1058 = vmul.f32 %v997, %v1028
        %v1059 = vmul.f32 %v997, %v1029
        %v1060 = vmul.f32 %v997, %v1030
        %v1061 = vmul.f32 %v1001, %v1028
        %v1062 = vmul.f32 %v1001, %v1029
        %v1063 = vmul.f32 %v1001, %v1030
        %v1064 = vmul.f32 %v1005, %v1028
        %v1065 = vmul.f32 %v1005, %v1029
        %v1066 = vmul.f32 %v1005, %v1030
        %v1067 = vmul.f32 %v1009, %v1028
        %v1068 = vmul.f32 %v1009, %v1029
        %v1069 = vmul.f32 %v1009, %v1030
        %v1070 = vmul.f32 %v1013, %v1028
        %v1071 = vmul.f32 %v1013, %v1029
        %v1072 = vmul.f32 %v1013, %v1030
        %v1073 = vmul.f32 %v1017, %v1028
        %v1074 = vmul.f32 %v1017, %v1029
        %v1075 = vmul.f32 %v1017, %v1030
        %v1076 = vmul.f32 %v1021, %v1028
        %v1077 = vmul.f32 %v1021, %v1029
        %v1078 = vmul.f32 %v1021, %v1030
        %v1079 = vmul.f32 %v1025, %v1028
        %v1080 = vmul.f32 %v1025, %v1029
        %v1081 = vmul.f32 %v1025, %v1030
        %v1082 = vadd.f32 %v915, %v1034
        %v1083 = vadd.f32 %v916, %v1035
        %v1084 = vadd.f32 %v917, %v1036
        %v1085 = vadd.f32 %v918, %v1037
        %v1086 = vadd.f32 %v919, %v1038
        %v1087 = vadd.f32 %v920, %v1039
        %v1088 = vadd.f32 %v921, %v1040
        %v1089 = vadd.f32 %v922, %v1041
        %v1090 = vadd.f32 %v923, %v1042
        %v1091 = vadd.f32 %v924, %v1043
        %v1092 = vadd.f32 %v925, %v1044
        %v1093 = vadd.f32 %v926, %v1045
        %v1094 = vadd.f32 %v927, %v1046
        %v1095 = vadd.f32 %v928, %v1047
        %v1096 = vadd.f32 %v929, %v1048
        %v1097 = vadd.f32 %v930, %v1049
        %v1098 = vadd.f32 %v931, %v1050
        %v1099 = vadd.f32 %v932, %v1051
        %v1100 = vadd.f32 %v933, %v1052
        %v1101 = vadd.f32 %v934, %v1053
        %v1102 = vadd.f32 %v935, %v1054
        %v1103 = vadd.f32 %v936, %v1055
        %v1104 = vadd.f32 %v937, %v1056
        %v1105 = vadd.f32 %v938, %v1057
        %v1106 = vadd.f32 %v939, %v1058
        %v1107 = vadd.f32 %v940, %v1059
        %v1108 = vadd.f32 %v941, %v1060
        %v1109 = vadd.f32 %v942, %v1061
        %v1110 = vadd.f32 %v943, %v1062
        %v1111 = vadd.f32 %v944, %v1063
        %v1112 = vadd.f32 %v945, %v1064
        %v1113 = vadd.f32 %v946, %v1065
        %v1114 = vadd.f32 %v947, %v1066
        %v1115 = vadd.f32 %v948, %v1067
        %v1116 = vadd.f32 %v949, %v1068
        %v1117 = vadd.f32 %v950, %v1069
        %v1118 = vadd.f32 %v951, %v1070
        %v1119 = vadd.f32 %v952, %v1071
        %v1120 = vadd.f32 %v953, %v1072
        %v1121 = vadd.f32 %v954, %v1073
        %v1122 = vadd.f32 %v955, %v1074
        %v1123 = vadd.f32 %v956, %v1075
        %v1124 = vadd.f32 %v957, %v1076
        %v1125 = vadd.f32 %v958, %v1077
        %v1126 = vadd.f32 %v959, %v1078
        %v1127 = vadd.f32 %v960, %v1079
        %v1128 = vadd.f32 %v961, %v1080
        %v1129 = vadd.f32 %v962, %v1081
        %v1131 = vperm.slane %v371, 0
        %v1132 = vperm.slane %v371, 1
        %v1133 = vperm.slane %v371, 2
        %v1137 = vadd.f32 %v1082, %v1131
        %v1138 = vadd.f32 %v1083, %v1132
        %v1139 = vadd.f32 %v1084, %v1133
        %v1140 = vadd.f32 %v1085, %v1131
        %v1141 = vadd.f32 %v1086, %v1132
        %v1142 = vadd.f32 %v1087, %v1133
        %v1143 = vadd.f32 %v1088, %v1131
        %v1144 = vadd.f32 %v1089, %v1132
        %v1145 = vadd.f32 %v1090, %v1133
        %v1146 = vadd.f32 %v1091, %v1131
        %v1147 = vadd.f32 %v1092, %v1132
        %v1148 = vadd.f32 %v1093, %v1133
        %v1149 = vadd.f32 %v1094, %v1131
        %v1150 = vadd.f32 %v1095, %v1132
        %v1151 = vadd.f32 %v1096, %v1133
        %v1152 = vadd.f32 %v1097, %v1131
        %v1153 = vadd.f32 %v1098, %v1132
        %v1154 = vadd.f32 %v1099, %v1133
        %v1155 = vadd.f32 %v1100, %v1131
        %v1156 = vadd.f32 %v1101, %v1132
        %v1157 = vadd.f32 %v1102, %v1133
        %v1158 = vadd.f32 %v1103, %v1131
        %v1159 = vadd.f32 %v1104, %v1132
        %v1160 = vadd.f32 %v1105, %v1133
        %v1161 = vadd.f32 %v1106, %v1131
        %v1162 = vadd.f32 %v1107, %v1132
        %v1163 = vadd.f32 %v1108, %v1133
        %v1164 = vadd.f32 %v1109, %v1131
        %v1165 = vadd.f32 %v1110, %v1132
        %v1166 = vadd.f32 %v1111, %v1133
        %v1167 = vadd.f32 %v1112, %v1131
        %v1168 = vadd.f32 %v1113, %v1132
        %v1169 = vadd.f32 %v1114, %v1133
        %v1170 = vadd.f32 %v1115, %v1131
        %v1171 = vadd.f32 %v1116, %v1132
        %v1172 = vadd.f32 %v1117, %v1133
        %v1173 = vadd.f32 %v1118, %v1131
        %v1174 = vadd.f32 %v1119, %v1132
        %v1175 = vadd.f32 %v1120, %v1133
        %v1176 = vadd.f32 %v1121, %v1131
        %v1177 = vadd.f32 %v1122, %v1132
        %v1178 = vadd.f32 %v1123, %v1133
        %v1179 = vadd.f32 %v1124, %v1131
        %v1180 = vadd.f32 %v1125, %v1132
        %v1181 = vadd.f32 %v1126, %v1133
        %v1182 = vadd.f32 %v1127, %v1131
        %v1183 = vadd.f32 %v1128, %v1132
        %v1184 = vadd.f32 %v1129, %v1133
        %v1185 = vpack.c.bf16 %v791, %v789
        %v1186 = vpack.c.bf16 %v796, %v794
        %v1187 = vpack.c.bf16 %v801, %v799
        %v1188 = vpack.c.bf16 %v806, %v804
        %v1189 = vpack.c.bf16 %v811, %v809
        %v1190 = vpack.c.bf16 %v816, %v814
        %v1191 = vpack.c.bf16 %v821, %v819
        %v1192 = vpack.c.bf16 %v826, %v824
        %v1193 = vld [vmem:[#allocation5] sm:$0xff]
        %v1194 = vld [vmem:[#allocation5 + $0x8] sm:$0xf]
        %v1195 = vld [vmem:[#allocation5 + $0xc] sm:$0xff]
        %v1196 = vld [vmem:[#allocation5 + $0x14] sm:$0xf]
        %v1197 = vld [vmem:[#allocation5 + $0x18] sm:$0xff]
        %v1198 = vld [vmem:[#allocation5 + $0x20] sm:$0xf]
        %v1199 = vld [vmem:[#allocation5 + $0x24] sm:$0xff]
        %v1200 = vld [vmem:[#allocation5 + $0x2c] sm:$0xf]
        %v1201 = vld [vmem:[#allocation5 + $0x30] sm:$0xff]
        %v1202 = vld [vmem:[#allocation5 + $0x38] sm:$0xf]
        %v1203 = vld [vmem:[#allocation5 + $0x3c] sm:$0xff]
        %v1204 = vld [vmem:[#allocation5 + $0x44] sm:$0xf]
        %v1205 = vld [vmem:[#allocation5 + $0x48] sm:$0xff]
        %v1206 = vld [vmem:[#allocation5 + $0x50] sm:$0xf]
        %v1207 = vld [vmem:[#allocation5 + $0x54] sm:$0xff]
        %v1208 = vld [vmem:[#allocation5 + $0x5c] sm:$0xf]
        %v1209 = vld [vmem:[#allocation5 + $0x60] sm:$0xff]
        %v1210 = vld [vmem:[#allocation5 + $0x68] sm:$0xf]
        %v1211 = vld [vmem:[#allocation5 + $0x6c] sm:$0xff]
        %v1212 = vld [vmem:[#allocation5 + $0x74] sm:$0xf]
        %v1213 = vld [vmem:[#allocation5 + $0x78] sm:$0xff]
        %v1214 = vld [vmem:[#allocation5 + $0x80] sm:$0xf]
        %v1215 = vld [vmem:[#allocation5 + $0x84] sm:$0xff]
        %v1216 = vld [vmem:[#allocation5 + $0x8c] sm:$0xf]
        %v1217 = vld [vmem:[#allocation5 + $0x90] sm:$0xff]
        %v1218 = vld [vmem:[#allocation5 + $0x98] sm:$0xf]
        %v1219 = vld [vmem:[#allocation5 + $0x9c] sm:$0xff]
        %v1220 = vld [vmem:[#allocation5 + $0xa4] sm:$0xf]
        %v1221 = vld [vmem:[#allocation5 + $0xa8] sm:$0xff]
        %v1222 = vld [vmem:[#allocation5 + $0xb0] sm:$0xf]
        %v1223 = vld [vmem:[#allocation5 + $0xb4] sm:$0xff]
        %v1224 = vld [vmem:[#allocation5 + $0xbc] sm:$0xf]
        %v1257 = vunpack.c.l.b16 %v1193
        %v1258 = vunpack.c.h.b16 %v1193
        %v1259 = vunpack.c.l.b16 %v1194
        %v1260 = vunpack.c.l.b16 %v1195
        %v1261 = vunpack.c.h.b16 %v1195
        %v1262 = vunpack.c.l.b16 %v1196
        %v1263 = vunpack.c.l.b16 %v1197
        %v1264 = vunpack.c.h.b16 %v1197
        %v1265 = vunpack.c.l.b16 %v1198
        %v1266 = vunpack.c.l.b16 %v1199
        %v1267 = vunpack.c.h.b16 %v1199
        %v1268 = vunpack.c.l.b16 %v1200
        %v1269 = vunpack.c.l.b16 %v1201
        %v1270 = vunpack.c.h.b16 %v1201
        %v1271 = vunpack.c.l.b16 %v1202
        %v1272 = vunpack.c.l.b16 %v1203
        %v1273 = vunpack.c.h.b16 %v1203
        %v1274 = vunpack.c.l.b16 %v1204
        %v1275 = vunpack.c.l.b16 %v1205
        %v1276 = vunpack.c.h.b16 %v1205
        %v1277 = vunpack.c.l.b16 %v1206
        %v1278 = vunpack.c.l.b16 %v1207
        %v1279 = vunpack.c.h.b16 %v1207
        %v1280 = vunpack.c.l.b16 %v1208
        %v1281 = vunpack.c.l.b16 %v1209
        %v1282 = vunpack.c.h.b16 %v1209
        %v1283 = vunpack.c.l.b16 %v1210
        %v1284 = vunpack.c.l.b16 %v1211
        %v1285 = vunpack.c.h.b16 %v1211
        %v1286 = vunpack.c.l.b16 %v1212
        %v1287 = vunpack.c.l.b16 %v1213
        %v1288 = vunpack.c.h.b16 %v1213
        %v1289 = vunpack.c.l.b16 %v1214
        %v1290 = vunpack.c.l.b16 %v1215
        %v1291 = vunpack.c.h.b16 %v1215
        %v1292 = vunpack.c.l.b16 %v1216
        %v1293 = vunpack.c.l.b16 %v1217
        %v1294 = vunpack.c.h.b16 %v1217
        %v1295 = vunpack.c.l.b16 %v1218
        %v1296 = vunpack.c.l.b16 %v1219
        %v1297 = vunpack.c.h.b16 %v1219
        %v1298 = vunpack.c.l.b16 %v1220
        %v1299 = vunpack.c.l.b16 %v1221
        %v1300 = vunpack.c.h.b16 %v1221
        %v1301 = vunpack.c.l.b16 %v1222
        %v1302 = vunpack.c.l.b16 %v1223
        %v1303 = vunpack.c.h.b16 %v1223
        %v1304 = vunpack.c.l.b16 %v1224
        %v1305 = vpack.c.b16 %v1260, %v1257
        %v1306 = vpack.c.b16 %v1261, %v1258
        %v1307 = vpack.c.b16 %v1262, %v1259
        %v1308 = vpack.c.b16 %v1266, %v1263
        %v1309 = vpack.c.b16 %v1267, %v1264
        %v1310 = vpack.c.b16 %v1268, %v1265
        %v1311 = vpack.c.b16 %v1272, %v1269
        %v1312 = vpack.c.b16 %v1273, %v1270
        %v1313 = vpack.c.b16 %v1274, %v1271
        %v1314 = vpack.c.b16 %v1278, %v1275
        %v1315 = vpack.c.b16 %v1279, %v1276
        %v1316 = vpack.c.b16 %v1280, %v1277
        %v1317 = vpack.c.b16 %v1284, %v1281
        %v1318 = vpack.c.b16 %v1285, %v1282
        %v1319 = vpack.c.b16 %v1286, %v1283
        %v1320 = vpack.c.b16 %v1290, %v1287
        %v1321 = vpack.c.b16 %v1291, %v1288
        %v1322 = vpack.c.b16 %v1292, %v1289
        %v1323 = vpack.c.b16 %v1296, %v1293
        %v1324 = vpack.c.b16 %v1297, %v1294
        %v1325 = vpack.c.b16 %v1298, %v1295
        %v1326 = vpack.c.b16 %v1302, %v1299
        %v1327 = vpack.c.b16 %v1303, %v1300
        %v1328 = vpack.c.b16 %v1304, %v1301
        %1353 = vmatpush.bf16.msra.mxu0 %v1326
        %1354 = vmatpush.bf16.msra.mxu0 %v1323
        %1355 = vmatpush.bf16.msra.mxu0 %v1320
        %1356 = vmatpush.bf16.msra.mxu0 %v1317
        %1357 = vmatpush.bf16.msra.mxu0 %v1314
        %1358 = vmatpush.bf16.msra.mxu0 %v1311
        %1359 = vmatpush.bf16.msra.mxu0 %v1308
        %1360 = vmatpush.bf16.msra.mxu0 %v1305
        %1361 = vmatmul.bf16.gmra.mxu0 %v1185
        %v1362 = vpop.f32.mrf.mxu0
        %v1363 = vadd.f32 0.0, %v1362
        %v1364 = vpop.f32.mrf.mxu0
        %v1365 = vadd.f32 0.0, %v1364
        %1366 = vmatmul.bf16.gmra.mxu0 %v1186
        %v1367 = vpop.f32.mrf.mxu0
        %v1368 = vadd.f32 0.0, %v1367
        %v1369 = vpop.f32.mrf.mxu0
        %v1370 = vadd.f32 0.0, %v1369
        %1371 = vmatmul.bf16.gmra.mxu0 %v1187
        %v1372 = vpop.f32.mrf.mxu0
        %v1373 = vadd.f32 0.0, %v1372
        %v1374 = vpop.f32.mrf.mxu0
        %v1375 = vadd.f32 0.0, %v1374
        %1376 = vmatmul.bf16.gmra.mxu0 %v1188
        %v1377 = vpop.f32.mrf.mxu0
        %v1378 = vadd.f32 0.0, %v1377
        %v1379 = vpop.f32.mrf.mxu0
        %v1380 = vadd.f32 0.0, %v1379
        %1381 = vmatmul.bf16.gmra.mxu0 %v1189
        %v1382 = vpop.f32.mrf.mxu0
        %v1383 = vadd.f32 0.0, %v1382
        %v1384 = vpop.f32.mrf.mxu0
        %v1385 = vadd.f32 0.0, %v1384
        %1386 = vmatmul.bf16.gmra.mxu0 %v1190
        %v1387 = vpop.f32.mrf.mxu0
        %v1388 = vadd.f32 0.0, %v1387
        %v1389 = vpop.f32.mrf.mxu0
        %v1390 = vadd.f32 0.0, %v1389
        %1391 = vmatmul.bf16.gmra.mxu0 %v1191
        %v1392 = vpop.f32.mrf.mxu0
        %v1393 = vadd.f32 0.0, %v1392
        %v1394 = vpop.f32.mrf.mxu0
        %v1395 = vadd.f32 0.0, %v1394
        %1396 = vmatmul.bf16.gmra.mxu0 %v1192
        %v1397 = vpop.f32.mrf.mxu0
        %v1398 = vadd.f32 0.0, %v1397
        %v1399 = vpop.f32.mrf.mxu0
        %v1400 = vadd.f32 0.0, %v1399
        %1401 = vdwg.mxu0
        %1402 = vmatpush.bf16.msra.mxu0 %v1327
        %1403 = vmatpush.bf16.msra.mxu0 %v1324
        %1404 = vmatpush.bf16.msra.mxu0 %v1321
        %1405 = vmatpush.bf16.msra.mxu0 %v1318
        %1406 = vmatpush.bf16.msra.mxu0 %v1315
        %1407 = vmatpush.bf16.msra.mxu0 %v1312
        %1408 = vmatpush.bf16.msra.mxu0 %v1309
        %1409 = vmatpush.bf16.msra.mxu0 %v1306
        %1410 = vmatmul.bf16.gmra.mxu0 %v1185
        %v1411 = vpop.f32.mrf.mxu0
        %v1412 = vadd.f32 0.0, %v1411
        %v1413 = vpop.f32.mrf.mxu0
        %v1414 = vadd.f32 0.0, %v1413
        %1415 = vmatmul.bf16.gmra.mxu0 %v1186
        %v1416 = vpop.f32.mrf.mxu0
        %v1417 = vadd.f32 0.0, %v1416
        %v1418 = vpop.f32.mrf.mxu0
        %v1419 = vadd.f32 0.0, %v1418
        %1420 = vmatmul.bf16.gmra.mxu0 %v1187
        %v1421 = vpop.f32.mrf.mxu0
        %v1422 = vadd.f32 0.0, %v1421
        %v1423 = vpop.f32.mrf.mxu0
        %v1424 = vadd.f32 0.0, %v1423
        %1425 = vmatmul.bf16.gmra.mxu0 %v1188
        %v1426 = vpop.f32.mrf.mxu0
        %v1427 = vadd.f32 0.0, %v1426
        %v1428 = vpop.f32.mrf.mxu0
        %v1429 = vadd.f32 0.0, %v1428
        %1430 = vmatmul.bf16.gmra.mxu0 %v1189
        %v1431 = vpop.f32.mrf.mxu0
        %v1432 = vadd.f32 0.0, %v1431
        %v1433 = vpop.f32.mrf.mxu0
        %v1434 = vadd.f32 0.0, %v1433
        %1435 = vmatmul.bf16.gmra.mxu0 %v1190
        %v1436 = vpop.f32.mrf.mxu0
        %v1437 = vadd.f32 0.0, %v1436
        %v1438 = vpop.f32.mrf.mxu0
        %v1439 = vadd.f32 0.0, %v1438
        %1440 = vmatmul.bf16.gmra.mxu0 %v1191
        %v1441 = vpop.f32.mrf.mxu0
        %v1442 = vadd.f32 0.0, %v1441
        %v1443 = vpop.f32.mrf.mxu0
        %v1444 = vadd.f32 0.0, %v1443
        %1445 = vmatmul.bf16.gmra.mxu0 %v1192
        %v1446 = vpop.f32.mrf.mxu0
        %v1447 = vadd.f32 0.0, %v1446
        %v1448 = vpop.f32.mrf.mxu0
        %v1449 = vadd.f32 0.0, %v1448
        %1450 = vdwg.mxu0
        %1451 = vmatpush.bf16.msra.mxu0 %v1328
        %1452 = vmatpush.bf16.msra.mxu0 %v1325
        %1453 = vmatpush.bf16.msra.mxu0 %v1322
        %1454 = vmatpush.bf16.msra.mxu0 %v1319
        %1455 = vmatpush.bf16.msra.mxu0 %v1316
        %1456 = vmatpush.bf16.msra.mxu0 %v1313
        %1457 = vmatpush.bf16.msra.mxu0 %v1310
        %1458 = vmatpush.bf16.msra.mxu0 %v1307
        %1459 = vmatmul.bf16.gmra.mxu0 %v1185
        %v1460 = vpop.f32.mrf.mxu0
        %v1461 = vadd.f32 0.0, %v1460
        %v1462 = vpop.f32.mrf.mxu0
        %v1463 = vadd.f32 0.0, %v1462
        %1464 = vmatmul.bf16.gmra.mxu0 %v1186
        %v1465 = vpop.f32.mrf.mxu0
        %v1466 = vadd.f32 0.0, %v1465
        %v1467 = vpop.f32.mrf.mxu0
        %v1468 = vadd.f32 0.0, %v1467
        %1469 = vmatmul.bf16.gmra.mxu0 %v1187
        %v1470 = vpop.f32.mrf.mxu0
        %v1471 = vadd.f32 0.0, %v1470
        %v1472 = vpop.f32.mrf.mxu0
        %v1473 = vadd.f32 0.0, %v1472
        %1474 = vmatmul.bf16.gmra.mxu0 %v1188
        %v1475 = vpop.f32.mrf.mxu0
        %v1476 = vadd.f32 0.0, %v1475
        %v1477 = vpop.f32.mrf.mxu0
        %v1478 = vadd.f32 0.0, %v1477
        %1479 = vmatmul.bf16.gmra.mxu0 %v1189
        %v1480 = vpop.f32.mrf.mxu0
        %v1481 = vadd.f32 0.0, %v1480
        %v1482 = vpop.f32.mrf.mxu0
        %v1483 = vadd.f32 0.0, %v1482
        %1484 = vmatmul.bf16.gmra.mxu0 %v1190
        %v1485 = vpop.f32.mrf.mxu0
        %v1486 = vadd.f32 0.0, %v1485
        %v1487 = vpop.f32.mrf.mxu0
        %v1488 = vadd.f32 0.0, %v1487
        %1489 = vmatmul.bf16.gmra.mxu0 %v1191
        %v1490 = vpop.f32.mrf.mxu0
        %v1491 = vadd.f32 0.0, %v1490
        %v1492 = vpop.f32.mrf.mxu0
        %v1493 = vadd.f32 0.0, %v1492
        %1494 = vmatmul.bf16.gmra.mxu0 %v1192
        %v1495 = vpop.f32.mrf.mxu0
        %v1496 = vadd.f32 0.0, %v1495
        %v1497 = vpop.f32.mrf.mxu0
        %v1498 = vadd.f32 0.0, %v1497
        %1499 = vdwg.mxu0
        %v1500 = vadd.f32 %v1137, %v1363
        %v1501 = vadd.f32 %v1138, %v1412
        %v1502 = vadd.f32 %v1139, %v1461
        %v1503 = vadd.f32 %v1140, %v1365
        %v1504 = vadd.f32 %v1141, %v1414
        %v1505 = vadd.f32 %v1142, %v1463
        %v1506 = vadd.f32 %v1143, %v1368
        %v1507 = vadd.f32 %v1144, %v1417
        %v1508 = vadd.f32 %v1145, %v1466
        %v1509 = vadd.f32 %v1146, %v1370
        %v1510 = vadd.f32 %v1147, %v1419
        %v1511 = vadd.f32 %v1148, %v1468
        %v1512 = vadd.f32 %v1149, %v1373
        %v1513 = vadd.f32 %v1150, %v1422
        %v1514 = vadd.f32 %v1151, %v1471
        %v1515 = vadd.f32 %v1152, %v1375
        %v1516 = vadd.f32 %v1153, %v1424
        %v1517 = vadd.f32 %v1154, %v1473
        %v1518 = vadd.f32 %v1155, %v1378
        %v1519 = vadd.f32 %v1156, %v1427
        %v1520 = vadd.f32 %v1157, %v1476
        %v1521 = vadd.f32 %v1158, %v1380
        %v1522 = vadd.f32 %v1159, %v1429
        %v1523 = vadd.f32 %v1160, %v1478
        %v1524 = vadd.f32 %v1161, %v1383
        %v1525 = vadd.f32 %v1162, %v1432
        %v1526 = vadd.f32 %v1163, %v1481
        %v1527 = vadd.f32 %v1164, %v1385
        %v1528 = vadd.f32 %v1165, %v1434
        %v1529 = vadd.f32 %v1166, %v1483
        %v1530 = vadd.f32 %v1167, %v1388
        %v1531 = vadd.f32 %v1168, %v1437
        %v1532 = vadd.f32 %v1169, %v1486
        %v1533 = vadd.f32 %v1170, %v1390
        %v1534 = vadd.f32 %v1171, %v1439
        %v1535 = vadd.f32 %v1172, %v1488
        %v1536 = vadd.f32 %v1173, %v1393
        %v1537 = vadd.f32 %v1174, %v1442
        %v1538 = vadd.f32 %v1175, %v1491
        %v1539 = vadd.f32 %v1176, %v1395
        %v1540 = vadd.f32 %v1177, %v1444
        %v1541 = vadd.f32 %v1178, %v1493
        %v1542 = vadd.f32 %v1179, %v1398
        %v1543 = vadd.f32 %v1180, %v1447
        %v1544 = vadd.f32 %v1181, %v1496
        %v1545 = vadd.f32 %v1182, %v1400
        %v1546 = vadd.f32 %v1183, %v1449
        %v1547 = vadd.f32 %v1184, %v1498
        %v1548 = vmax.f32 %v1500, 0.0
        %v1549 = vmax.f32 %v1501, 0.0
        %v1550 = vmax.f32 %v1502, 0.0
        %v1551 = vmax.f32 %v1503, 0.0
        %v1552 = vmax.f32 %v1504, 0.0
        %v1553 = vmax.f32 %v1505, 0.0
        %v1554 = vmax.f32 %v1506, 0.0
        %v1555 = vmax.f32 %v1507, 0.0
        %v1556 = vmax.f32 %v1508, 0.0
        %v1557 = vmax.f32 %v1509, 0.0
        %v1558 = vmax.f32 %v1510, 0.0
        %v1559 = vmax.f32 %v1511, 0.0
        %v1560 = vmax.f32 %v1512, 0.0
        %v1561 = vmax.f32 %v1513, 0.0
        %v1562 = vmax.f32 %v1514, 0.0
        %v1563 = vmax.f32 %v1515, 0.0
        %v1564 = vmax.f32 %v1516, 0.0
        %v1565 = vmax.f32 %v1517, 0.0
        %v1566 = vmax.f32 %v1518, 0.0
        %v1567 = vmax.f32 %v1519, 0.0
        %v1568 = vmax.f32 %v1520, 0.0
        %v1569 = vmax.f32 %v1521, 0.0
        %v1570 = vmax.f32 %v1522, 0.0
        %v1571 = vmax.f32 %v1523, 0.0
        %v1572 = vmax.f32 %v1524, 0.0
        %v1573 = vmax.f32 %v1525, 0.0
        %v1574 = vmax.f32 %v1526, 0.0
        %v1575 = vmax.f32 %v1527, 0.0
        %v1576 = vmax.f32 %v1528, 0.0
        %v1577 = vmax.f32 %v1529, 0.0
        %v1578 = vmax.f32 %v1530, 0.0
        %v1579 = vmax.f32 %v1531, 0.0
        %v1580 = vmax.f32 %v1532, 0.0
        %v1581 = vmax.f32 %v1533, 0.0
        %v1582 = vmax.f32 %v1534, 0.0
        %v1583 = vmax.f32 %v1535, 0.0
        %v1584 = vmax.f32 %v1536, 0.0
        %v1585 = vmax.f32 %v1537, 0.0
        %v1586 = vmax.f32 %v1538, 0.0
        %v1587 = vmax.f32 %v1539, 0.0
        %v1588 = vmax.f32 %v1540, 0.0
        %v1589 = vmax.f32 %v1541, 0.0
        %v1590 = vmax.f32 %v1542, 0.0
        %v1591 = vmax.f32 %v1543, 0.0
        %v1592 = vmax.f32 %v1544, 0.0
        %v1593 = vmax.f32 %v1545, 0.0
        %v1594 = vmax.f32 %v1546, 0.0
        %v1595 = vmax.f32 %v1547, 0.0
        %v1596 = vpack.c.bf16 %v1551, %v1548
        %v1597 = vpack.c.bf16 %v1552, %v1549
        %v1598 = vpack.c.bf16 %v1553, %v1550
        %v1599 = vpack.c.bf16 %v1557, %v1554
        %v1600 = vpack.c.bf16 %v1558, %v1555
        %v1601 = vpack.c.bf16 %v1559, %v1556
        %v1602 = vpack.c.bf16 %v1563, %v1560
        %v1603 = vpack.c.bf16 %v1564, %v1561
        %v1604 = vpack.c.bf16 %v1565, %v1562
        %v1605 = vpack.c.bf16 %v1569, %v1566
        %v1606 = vpack.c.bf16 %v1570, %v1567
        %v1607 = vpack.c.bf16 %v1571, %v1568
        %v1608 = vpack.c.bf16 %v1575, %v1572
        %v1609 = vpack.c.bf16 %v1576, %v1573
        %v1610 = vpack.c.bf16 %v1577, %v1574
        %v1611 = vpack.c.bf16 %v1581, %v1578
        %v1612 = vpack.c.bf16 %v1582, %v1579
        %v1613 = vpack.c.bf16 %v1583, %v1580
        %v1614 = vpack.c.bf16 %v1587, %v1584
        %v1615 = vpack.c.bf16 %v1588, %v1585
        %v1616 = vpack.c.bf16 %v1589, %v1586
        %v1617 = vpack.c.bf16 %v1593, %v1590
        %v1618 = vpack.c.bf16 %v1594, %v1591
        %v1619 = vpack.c.bf16 %v1595, %v1592
        %v1668 = vunpack.c.l.b16 %v303
        %v1669 = vunpack.c.l.b16 %v304
        %v1670 = vunpack.c.l.b16 %v305
        %v1671 = vunpack.c.l.b16 %v306
        %v1672 = vunpack.c.l.b16 %v307
        %v1673 = vunpack.c.l.b16 %v308
        %v1674 = vunpack.c.l.b16 %v309
        %v1675 = vunpack.c.l.b16 %v310
        %v1676 = vunpack.c.l.b16 %v311
        %v1677 = vunpack.c.l.b16 %v312
        %v1678 = vunpack.c.l.b16 %v313
        %v1679 = vunpack.c.l.b16 %v314
        %v1680 = vunpack.c.l.b16 %v315
        %v1681 = vunpack.c.l.b16 %v316
        %v1682 = vunpack.c.l.b16 %v317
        %v1683 = vunpack.c.l.b16 %v318
        %v1684 = vunpack.c.l.b16 %v319
        %v1685 = vunpack.c.l.b16 %v320
        %v1686 = vunpack.c.l.b16 %v321
        %v1687 = vunpack.c.l.b16 %v322
        %v1688 = vunpack.c.l.b16 %v323
        %v1689 = vunpack.c.l.b16 %v324
        %v1690 = vunpack.c.l.b16 %v325
        %v1691 = vunpack.c.l.b16 %v326
        %v1692 = vunpack.c.l.b16 %v327
        %v1693 = vunpack.c.l.b16 %v328
        %v1694 = vunpack.c.l.b16 %v329
        %v1695 = vunpack.c.l.b16 %v330
        %v1696 = vunpack.c.l.b16 %v331
        %v1697 = vunpack.c.l.b16 %v332
        %v1698 = vunpack.c.l.b16 %v333
        %v1699 = vunpack.c.l.b16 %v334
        %v1700 = vunpack.c.l.b16 %v335
        %v1701 = vunpack.c.l.b16 %v336
        %v1702 = vunpack.c.l.b16 %v337
        %v1703 = vunpack.c.l.b16 %v338
        %v1704 = vunpack.c.l.b16 %v339
        %v1705 = vunpack.c.l.b16 %v340
        %v1706 = vunpack.c.l.b16 %v341
        %v1707 = vunpack.c.l.b16 %v342
        %v1708 = vunpack.c.l.b16 %v343
        %v1709 = vunpack.c.l.b16 %v344
        %v1710 = vunpack.c.l.b16 %v345
        %v1711 = vunpack.c.l.b16 %v346
        %v1712 = vunpack.c.l.b16 %v347
        %v1713 = vunpack.c.l.b16 %v348
        %v1714 = vunpack.c.l.b16 %v349
        %v1715 = vunpack.c.l.b16 %v350
        %v1716 = vpack.c.b16 %v1669, %v1668
        %v1717 = vpack.c.b16 %v1671, %v1670
        %v1718 = vpack.c.b16 %v1673, %v1672
        %v1719 = vpack.c.b16 %v1675, %v1674
        %v1720 = vpack.c.b16 %v1677, %v1676
        %v1721 = vpack.c.b16 %v1679, %v1678
        %v1722 = vpack.c.b16 %v1681, %v1680
        %v1723 = vpack.c.b16 %v1683, %v1682
        %v1724 = vpack.c.b16 %v1685, %v1684
        %v1725 = vpack.c.b16 %v1687, %v1686
        %v1726 = vpack.c.b16 %v1689, %v1688
        %v1727 = vpack.c.b16 %v1691, %v1690
        %v1728 = vpack.c.b16 %v1693, %v1692
        %v1729 = vpack.c.b16 %v1695, %v1694
        %v1730 = vpack.c.b16 %v1697, %v1696
        %v1731 = vpack.c.b16 %v1699, %v1698
        %v1732 = vpack.c.b16 %v1701, %v1700
        %v1733 = vpack.c.b16 %v1703, %v1702
        %v1734 = vpack.c.b16 %v1705, %v1704
        %v1735 = vpack.c.b16 %v1707, %v1706
        %v1736 = vpack.c.b16 %v1709, %v1708
        %v1737 = vpack.c.b16 %v1711, %v1710
        %v1738 = vpack.c.b16 %v1713, %v1712
        %v1739 = vpack.c.b16 %v1715, %v1714
        %1764 = vmatpush.bf16.msra.mxu0 %v1723
        %1765 = vmatpush.bf16.msra.mxu0 %v1722
        %1766 = vmatpush.bf16.msra.mxu0 %v1721
        %1767 = vmatpush.bf16.msra.mxu0 %v1720
        %1768 = vmatpush.bf16.msra.mxu0 %v1719
        %1769 = vmatpush.bf16.msra.mxu0 %v1718
        %1770 = vmatpush.bf16.msra.mxu0 %v1717
        %1771 = vmatpush.bf16.msra.mxu0 %v1716
        %1772 = vmatmul.bf16.gmra.mxu0 %v1596
        %v1773 = vpop.f32.mrf.mxu0
        %v1774 = vadd.f32 %v374, %v1773
        %v1775 = vpop.f32.mrf.mxu0
        %v1776 = vadd.f32 %v374, %v1775
        %1777 = vmatmul.bf16.gmra.mxu0 %v1599
        %v1778 = vpop.f32.mrf.mxu0
        %v1779 = vadd.f32 %v374, %v1778
        %v1780 = vpop.f32.mrf.mxu0
        %v1781 = vadd.f32 %v374, %v1780
        %1782 = vmatmul.bf16.gmra.mxu0 %v1602
        %v1783 = vpop.f32.mrf.mxu0
        %v1784 = vadd.f32 %v374, %v1783
        %v1785 = vpop.f32.mrf.mxu0
        %v1786 = vadd.f32 %v374, %v1785
        %1787 = vmatmul.bf16.gmra.mxu0 %v1605
        %v1788 = vpop.f32.mrf.mxu0
        %v1789 = vadd.f32 %v374, %v1788
        %v1790 = vpop.f32.mrf.mxu0
        %v1791 = vadd.f32 %v374, %v1790
        %1792 = vmatmul.bf16.gmra.mxu0 %v1608
        %v1793 = vpop.f32.mrf.mxu0
        %v1794 = vadd.f32 %v374, %v1793
        %v1795 = vpop.f32.mrf.mxu0
        %v1796 = vadd.f32 %v374, %v1795
        %1797 = vmatmul.bf16.gmra.mxu0 %v1611
        %v1798 = vpop.f32.mrf.mxu0
        %v1799 = vadd.f32 %v374, %v1798
        %v1800 = vpop.f32.mrf.mxu0
        %v1801 = vadd.f32 %v374, %v1800
        %1802 = vmatmul.bf16.gmra.mxu0 %v1614
        %v1803 = vpop.f32.mrf.mxu0
        %v1804 = vadd.f32 %v374, %v1803
        %v1805 = vpop.f32.mrf.mxu0
        %v1806 = vadd.f32 %v374, %v1805
        %1807 = vmatmul.bf16.gmra.mxu0 %v1617
        %v1808 = vpop.f32.mrf.mxu0
        %v1809 = vadd.f32 %v374, %v1808
        %v1810 = vpop.f32.mrf.mxu0
        %v1811 = vadd.f32 %v374, %v1810
        %1812 = vdwg.mxu0
        %1813 = vmatpush.bf16.msra.mxu0 %v1731
        %1814 = vmatpush.bf16.msra.mxu0 %v1730
        %1815 = vmatpush.bf16.msra.mxu0 %v1729
        %1816 = vmatpush.bf16.msra.mxu0 %v1728
        %1817 = vmatpush.bf16.msra.mxu0 %v1727
        %1818 = vmatpush.bf16.msra.mxu0 %v1726
        %1819 = vmatpush.bf16.msra.mxu0 %v1725
        %1820 = vmatpush.bf16.msra.mxu0 %v1724
        %1821 = vmatmul.bf16.gmra.mxu0 %v1597
        %v1822 = vpop.f32.mrf.mxu0
        %v1823 = vadd.f32 %v1774, %v1822
        %v1824 = vpop.f32.mrf.mxu0
        %v1825 = vadd.f32 %v1776, %v1824
        %1826 = vmatmul.bf16.gmra.mxu0 %v1600
        %v1827 = vpop.f32.mrf.mxu0
        %v1828 = vadd.f32 %v1779, %v1827
        %v1829 = vpop.f32.mrf.mxu0
        %v1830 = vadd.f32 %v1781, %v1829
        %1831 = vmatmul.bf16.gmra.mxu0 %v1603
        %v1832 = vpop.f32.mrf.mxu0
        %v1833 = vadd.f32 %v1784, %v1832
        %v1834 = vpop.f32.mrf.mxu0
        %v1835 = vadd.f32 %v1786, %v1834
        %1836 = vmatmul.bf16.gmra.mxu0 %v1606
        %v1837 = vpop.f32.mrf.mxu0
        %v1838 = vadd.f32 %v1789, %v1837
        %v1839 = vpop.f32.mrf.mxu0
        %v1840 = vadd.f32 %v1791, %v1839
        %1841 = vmatmul.bf16.gmra.mxu0 %v1609
        %v1842 = vpop.f32.mrf.mxu0
        %v1843 = vadd.f32 %v1794, %v1842
        %v1844 = vpop.f32.mrf.mxu0
        %v1845 = vadd.f32 %v1796, %v1844
        %1846 = vmatmul.bf16.gmra.mxu0 %v1612
        %v1847 = vpop.f32.mrf.mxu0
        %v1848 = vadd.f32 %v1799, %v1847
        %v1849 = vpop.f32.mrf.mxu0
        %v1850 = vadd.f32 %v1801, %v1849
        %1851 = vmatmul.bf16.gmra.mxu0 %v1615
        %v1852 = vpop.f32.mrf.mxu0
        %v1853 = vadd.f32 %v1804, %v1852
        %v1854 = vpop.f32.mrf.mxu0
        %v1855 = vadd.f32 %v1806, %v1854
        %1856 = vmatmul.bf16.gmra.mxu0 %v1618
        %v1857 = vpop.f32.mrf.mxu0
        %v1858 = vadd.f32 %v1809, %v1857
        %v1859 = vpop.f32.mrf.mxu0
        %v1860 = vadd.f32 %v1811, %v1859
        %1861 = vdwg.mxu0
        %1862 = vmatpush.bf16.msra.mxu0 %v1739
        %1863 = vmatpush.bf16.msra.mxu0 %v1738
        %1864 = vmatpush.bf16.msra.mxu0 %v1737
        %1865 = vmatpush.bf16.msra.mxu0 %v1736
        %1866 = vmatpush.bf16.msra.mxu0 %v1735
        %1867 = vmatpush.bf16.msra.mxu0 %v1734
        %1868 = vmatpush.bf16.msra.mxu0 %v1733
        %1869 = vmatpush.bf16.msra.mxu0 %v1732
        %1870 = vmatmul.bf16.gmra.mxu0 %v1598
        %v1871 = vpop.f32.mrf.mxu0
        %v1872 = vadd.f32 %v1823, %v1871
        %v1873 = vpop.f32.mrf.mxu0
        %v1874 = vadd.f32 %v1825, %v1873
        %1875 = vmatmul.bf16.gmra.mxu0 %v1601
        %v1876 = vpop.f32.mrf.mxu0
        %v1877 = vadd.f32 %v1828, %v1876
        %v1878 = vpop.f32.mrf.mxu0
        %v1879 = vadd.f32 %v1830, %v1878
        %1880 = vmatmul.bf16.gmra.mxu0 %v1604
        %v1881 = vpop.f32.mrf.mxu0
        %v1882 = vadd.f32 %v1833, %v1881
        %v1883 = vpop.f32.mrf.mxu0
        %v1884 = vadd.f32 %v1835, %v1883
        %1885 = vmatmul.bf16.gmra.mxu0 %v1607
        %v1886 = vpop.f32.mrf.mxu0
        %v1887 = vadd.f32 %v1838, %v1886
        %v1888 = vpop.f32.mrf.mxu0
        %v1889 = vadd.f32 %v1840, %v1888
        %1890 = vmatmul.bf16.gmra.mxu0 %v1610
        %v1891 = vpop.f32.mrf.mxu0
        %v1892 = vadd.f32 %v1843, %v1891
        %v1893 = vpop.f32.mrf.mxu0
        %v1894 = vadd.f32 %v1845, %v1893
        %1895 = vmatmul.bf16.gmra.mxu0 %v1613
        %v1896 = vpop.f32.mrf.mxu0
        %v1897 = vadd.f32 %v1848, %v1896
        %v1898 = vpop.f32.mrf.mxu0
        %v1899 = vadd.f32 %v1850, %v1898
        %1900 = vmatmul.bf16.gmra.mxu0 %v1616
        %v1901 = vpop.f32.mrf.mxu0
        %v1902 = vadd.f32 %v1853, %v1901
        %v1903 = vpop.f32.mrf.mxu0
        %v1904 = vadd.f32 %v1855, %v1903
        %1905 = vmatmul.bf16.gmra.mxu0 %v1619
        %v1906 = vpop.f32.mrf.mxu0
        %v1907 = vadd.f32 %v1858, %v1906
        %v1908 = vpop.f32.mrf.mxu0
        %v1909 = vadd.f32 %v1860, %v1908
        %1910 = vdwg.mxu0
        %v1911 = vmax.f32 %v1872, 0.0
        %v1912 = vmax.f32 %v1874, 0.0
        %v1913 = vmax.f32 %v1877, 0.0
        %v1914 = vmax.f32 %v1879, 0.0
        %v1915 = vmax.f32 %v1882, 0.0
        %v1916 = vmax.f32 %v1884, 0.0
        %v1917 = vmax.f32 %v1887, 0.0
        %v1918 = vmax.f32 %v1889, 0.0
        %v1919 = vmax.f32 %v1892, 0.0
        %v1920 = vmax.f32 %v1894, 0.0
        %v1921 = vmax.f32 %v1897, 0.0
        %v1922 = vmax.f32 %v1899, 0.0
        %v1923 = vmax.f32 %v1902, 0.0
        %v1924 = vmax.f32 %v1904, 0.0
        %v1925 = vmax.f32 %v1907, 0.0
        %v1926 = vmax.f32 %v1909, 0.0
        %v1927 = vpack.c.bf16 %v1912, %v1911
        %v1928 = vpack.c.bf16 %v1914, %v1913
        %v1929 = vpack.c.bf16 %v1916, %v1915
        %v1930 = vpack.c.bf16 %v1918, %v1917
        %v1931 = vpack.c.bf16 %v1920, %v1919
        %v1932 = vpack.c.bf16 %v1922, %v1921
        %v1933 = vpack.c.bf16 %v1924, %v1923
        %v1934 = vpack.c.bf16 %v1926, %v1925
        %v1951 = vunpack.c.l.b16 %v351
        %v1952 = vunpack.c.l.b16 %v352
        %v1953 = vunpack.c.l.b16 %v353
        %v1954 = vunpack.c.l.b16 %v354
        %v1955 = vunpack.c.l.b16 %v355
        %v1956 = vunpack.c.l.b16 %v356
        %v1957 = vunpack.c.l.b16 %v357
        %v1958 = vunpack.c.l.b16 %v358
        %v1959 = vunpack.c.l.b16 %v359
        %v1960 = vunpack.c.l.b16 %v360
        %v1961 = vunpack.c.l.b16 %v361
        %v1962 = vunpack.c.l.b16 %v362
        %v1963 = vunpack.c.l.b16 %v363
        %v1964 = vunpack.c.l.b16 %v364
        %v1965 = vunpack.c.l.b16 %v365
        %v1966 = vunpack.c.l.b16 %v366
        %v1967 = vpack.c.b16 %v1952, %v1951
        %v1968 = vpack.c.b16 %v1954, %v1953
        %v1969 = vpack.c.b16 %v1956, %v1955
        %v1970 = vpack.c.b16 %v1958, %v1957
        %v1971 = vpack.c.b16 %v1960, %v1959
        %v1972 = vpack.c.b16 %v1962, %v1961
        %v1973 = vpack.c.b16 %v1964, %v1963
        %v1974 = vpack.c.b16 %v1966, %v1965
        %1983 = vmatpush.bf16.msra.mxu0 %v1974
        %1984 = vmatpush.bf16.msra.mxu0 %v1973
        %1985 = vmatpush.bf16.msra.mxu0 %v1972
        %1986 = vmatpush.bf16.msra.mxu0 %v1971
        %1987 = vmatpush.bf16.msra.mxu0 %v1970
        %1988 = vmatpush.bf16.msra.mxu0 %v1969
        %1989 = vmatpush.bf16.msra.mxu0 %v1968
        %1990 = vmatpush.bf16.msra.mxu0 %v1967
        %1991 = vmatmul.bf16.gmra.mxu0 %v1927
        %v1992 = vpop.f32.mrf.mxu0
        %v1993 = vadd.f32 %v375, %v1992
        %v1994 = vpop.f32.mrf.mxu0
        %v1995 = vadd.f32 %v375, %v1994
        %1996 = vmatmul.bf16.gmra.mxu0 %v1928
        %v1997 = vpop.f32.mrf.mxu0
        %v1998 = vadd.f32 %v375, %v1997
        %v1999 = vpop.f32.mrf.mxu0
        %v2000 = vadd.f32 %v375, %v1999
        %2001 = vmatmul.bf16.gmra.mxu0 %v1929
        %v2002 = vpop.f32.mrf.mxu0
        %v2003 = vadd.f32 %v375, %v2002
        %v2004 = vpop.f32.mrf.mxu0
        %v2005 = vadd.f32 %v375, %v2004
        %2006 = vmatmul.bf16.gmra.mxu0 %v1930
        %v2007 = vpop.f32.mrf.mxu0
        %v2008 = vadd.f32 %v375, %v2007
        %v2009 = vpop.f32.mrf.mxu0
        %v2010 = vadd.f32 %v375, %v2009
        %2011 = vmatmul.bf16.gmra.mxu0 %v1931
        %v2012 = vpop.f32.mrf.mxu0
        %v2013 = vadd.f32 %v375, %v2012
        %v2014 = vpop.f32.mrf.mxu0
        %v2015 = vadd.f32 %v375, %v2014
        %2016 = vmatmul.bf16.gmra.mxu0 %v1932
        %v2017 = vpop.f32.mrf.mxu0
        %v2018 = vadd.f32 %v375, %v2017
        %v2019 = vpop.f32.mrf.mxu0
        %v2020 = vadd.f32 %v375, %v2019
        %2021 = vmatmul.bf16.gmra.mxu0 %v1933
        %v2022 = vpop.f32.mrf.mxu0
        %v2023 = vadd.f32 %v375, %v2022
        %v2024 = vpop.f32.mrf.mxu0
        %v2025 = vadd.f32 %v375, %v2024
        %2026 = vmatmul.bf16.gmra.mxu0 %v1934
        %v2027 = vpop.f32.mrf.mxu0
        %v2028 = vadd.f32 %v375, %v2027
        %v2029 = vpop.f32.mrf.mxu0
        %v2030 = vadd.f32 %v375, %v2029
        %2031 = vdwg.mxu0
        %2032 = vst [vmem:[%s268] sm:$0xff] %v1993
        %2033 = vst [vmem:[%s268 + $0x8] sm:$0xff] %v1995
        %2034 = vst [vmem:[%s268 + $0x10] sm:$0xff] %v1998
        %2035 = vst [vmem:[%s268 + $0x18] sm:$0xff] %v2000
        %2036 = vst [vmem:[%s268 + $0x20] sm:$0xff] %v2003
        %2037 = vst [vmem:[%s268 + $0x28] sm:$0xff] %v2005
        %2038 = vst [vmem:[%s268 + $0x30] sm:$0xff] %v2008
        %2039 = vst [vmem:[%s268 + $0x38] sm:$0xff] %v2010
        %2040 = vst [vmem:[%s268 + $0x40] sm:$0xff] %v2013
        %2041 = vst [vmem:[%s268 + $0x48] sm:$0xff] %v2015
        %2042 = vst [vmem:[%s268 + $0x50] sm:$0xff] %v2018
        %2043 = vst [vmem:[%s268 + $0x58] sm:$0xff] %v2020
        %2044 = vst [vmem:[%s268 + $0x60] sm:$0xff] %v2023
        %2045 = vst [vmem:[%s268 + $0x68] sm:$0xff] %v2025
        %2046 = vst [vmem:[%s268 + $0x70] sm:$0xff] %v2028
        %2047 = vst [vmem:[%s268 + $0x78] sm:$0xff] %v2030
        %s2048 = sand.u32 %s144, 1
        %s2049 = scalar_lea.sflag [#allocation4], %s2048
        %s2050 = sand.u32 %s144, 1
        %s2051 = smul.addr %s2050, 128
        %s2052 = scalar_lea.vmem [#allocation7], %s2051
        // Predicated region
        $region49: #{tpu_custom_call.1} parent=39 // pred_check
          %p2053 = pneg %p154
        $region50: #{tpu_custom_call.1} parent=39 // pred_check_branch
          %2055 = sbr.rel (%p2053) target = $region52
        $region51: #{tpu_custom_call.1} parent=39 // pred_region
          %s2056 = smul.u32 16, %s21
          %2058 = vsyncadd %s2049, 0
          %s2059 = smul.addr %s2056, 8
          %s2060 = scalar_lea.hbm %s5, %s2059
          %s2061 = sshll.u32 %s2052, 4
          %s2062 = int_to_ptr.vmem [resolvable:$true] %s2061
          %s2063 = sshll.u32 %s2060, 4
          %s2064 = int_to_ptr.hbm [resolvable:$true] %s2063
          %2069 = dma.vmem_to_hbm [thread:$0]  %s2062, 2048, %s2064, %s2049, 128, 128, 8
        $region52: #{tpu_custom_call.1} parent=39 // pred_fallthru
          _
      $region40: #{tpu_custom_call.1} parent=5 // pred_fallthru
        _
      %p2070 = scmp.le.s32.totalorder 2, %s16
      // Predicated region
      $region53: #{tpu_custom_call.1} parent=5 // pred_check
        %p2071 = pneg %p2070
      $region54: #{tpu_custom_call.1} parent=5 // pred_check_branch
        %2073 = sbr.rel (%p2071) target = $region56
      $region55: #{tpu_custom_call.1} parent=5 // pred_region
        %s2074 = ssub.s32 %s16, 2
        // Predicated region
        $region57: #{tpu_custom_call.1} parent=55 // pred_check
          %p2075 = pneg %p160
        $region58: #{tpu_custom_call.1} parent=55 // pred_check_branch
          %2077 = sbr.rel (%p2075) target = $region60
        $region59: #{tpu_custom_call.1} parent=55 // pred_region
          %s2078 = sand.u32 %s145, 1
          %s2079 = scalar_lea.sflag [#allocation4], %s2078
          %s2080 = sand.u32 %s145, 1
          %s2081 = smul.addr %s2080, 128
          %s2082 = scalar_lea.vmem [#allocation7], %s2081
          %2084 = dma.done %s2079, 2048
        $region60: #{tpu_custom_call.1} parent=55 // pred_fallthru
          _
      $region56: #{tpu_custom_call.1} parent=5 // pred_fallthru
        _
    $region6: #{tpu_custom_call.1} parent=1 // loop_footer
      %s20 = sadd.s32 1, %s16
    $region7: #{tpu_custom_call.1} parent=1 // loop_footer_branch
      %15 = sbr.rel target = $region3
    $region8: #{tpu_custom_call.1} parent=1 // loop_exit
      _
    %2085 = vsyncpa [#allocation3], 1
    %s2086 = scalar_lea.sflag [#allocation3], 1
    %2087 = vsyncpa %s2086, 1
    %2088 = vsyncpa [#allocation6], 1
    %2089 = vsyncpa [#allocation4], 1
    %s2090 = scalar_lea.sflag [#allocation4], 1
    %2091 = vsyncpa %s2090, 1

</llo_original>
